<compile_context>
chip_gen: v7x
topology: tpu7x:2x2x1
jax: 0.10.0
libtpu: 0.0.40
codegen_flags: <defaults>
</compile_context>

<pallas_src>
import functools

import numpy as np
import jax
import jax.numpy as jnp
from jax import lax
from jax.experimental import pallas as pl
from jax.experimental.pallas import tpu as pltpu


# ---------------------------------------------------------------------------
# Deterministic parameter construction (mirrors the module's __init__).
# TODO(synk): the original ALL_2x2_AR_FILTERS dict is not provided; 10
#             deterministic 2x2 filters are defined here in its place.
# ---------------------------------------------------------------------------
ALL_2x2_AR_FILTERS = {
    "f0": np.array([[1.0, 0.0], [0.0, 0.0]]),
    "f1": np.array([[0.0, 1.0], [0.0, 0.0]]),
    "f2": np.array([[0.0, 0.0], [1.0, 0.0]]),
    "f3": np.array([[0.0, 0.0], [0.0, 1.0]]),
    "f4": np.array([[1.0, -1.0], [0.0, 0.0]]),
    "f5": np.array([[0.0, 0.0], [1.0, -1.0]]),
    "f6": np.array([[1.0, 0.0], [-1.0, 0.0]]),
    "f7": np.array([[0.0, 1.0], [0.0, -1.0]]),
    "f8": np.array([[1.0, -1.0], [-1.0, 1.0]]),
    "f9": np.array([[0.25, 0.25], [0.25, 0.25]]),
}


def build_params():
    # conv weight: (O=10, C=3, kh=2, kw=2) — each 2x2 filter replicated over 3 chans
    filters = np.stack(
        [np.stack([f] * 3) for f in ALL_2x2_AR_FILTERS.values()]
    ).astype(np.float32)                           # (10, 3, 2, 2)
    conv_w = jnp.asarray(filters)
    # fc: weight = -I (10x10), bias = ones(10)  (PyTorch (out, in) convention)
    fc_w = -1.0 * jnp.eye(10, dtype=jnp.float32)
    fc_b = jnp.ones((10,), dtype=jnp.float32)
    return conv_w, fc_w, fc_b


# ---------------------------------------------------------------------------
# Pallas kernel: strip-mined shifted-add conv (VPU) + global max pool + FC
# + softmax.  One grid step = one TB-row batch tile; inside, 8-row strips.
# ---------------------------------------------------------------------------
def ar_kernel(x_ref, mask_ref, w_ref, fcwT_ref, fcb_ref, out_ref, *,
              img_w, pv, n_cin, strip):
    # x_ref    : (C, TB, HW) f32 VMEM — channels-major, spatial flattened on lanes
    # mask_ref : (1, PV)     f32 VMEM — 1.0 where flattened pos is a valid conv output
    # w_ref    : (O*4,)      f32 SMEM — channel-folded conv weights, order (o, di, dj)
    # fcwT_ref : (O, O)      f32 VMEM — fc weight transposed (in, out)
    # fcb_ref  : (1, O)      f32 VMEM — fc bias
    # out_ref  : (TB, O)     f32 VMEM — softmax probabilities
    TB, O = out_ref.shape
    shifts = (0, 1, img_w, img_w + 1)      # 2x2 taps: (0,0),(0,1),(1,0),(1,1)
    num_strips = TB // strip
    neg_inf = jnp.float32(-jnp.inf)

    # Hoisted loop invariants (JAX does not CSE broadcasts inside loops).
    valid = jnp.broadcast_to(mask_ref[...] > 0.5, (strip, pv))    # (SB, PV) bool
    fcwT = fcwT_ref[...]                                          # (O, O)
    bias_b = jnp.broadcast_to(fcb_ref[...], (strip, O))           # (SB, O)

    @pl.loop(0, num_strips)
    def _(s):
        row = pl.multiple_of(s * strip, strip)

        # Channel fold: valid because every filter is replicated across input
        # channels (checked in the wrapper), so sum_c w_c*x_c == w * sum_c x_c.
        xsum = x_ref[0, pl.ds(row, strip), :]
        for c in range(1, n_cin):
            xsum = xsum + x_ref[c, pl.ds(row, strip), :]          # (SB, HW)

        # 4 shifted views of the summed image, shared by all 10 out-channels.
        slabs = [xsum[:, k:k + pv] for k in shifts]               # 4 x (SB, PV)

        logits = bias_b                                           # start at fc bias
        for o in range(O):
            # conv map for output channel o: 4 scaled shifted adds on the VPU.
            conv = slabs[0] * w_ref[4 * o + 0]
            for t in range(1, 4):
                conv = conv + slabs[t] * w_ref[4 * o + t]
            # Mask row-wrap columns with -inf, global max pool, ReLU afterwards
            # (max(relu(x)) == relu(max(x)) since ReLU is monotonic).
            pooled = jnp.max(jnp.where(valid, conv, neg_inf),
                             axis=1, keepdims=True)               # (SB, 1)
            pooled = jnp.maximum(pooled, 0.0)
            # Linear(10,10) folded in as an outer-product accumulate (pure VPU).
            logits = logits + pooled * fcwT[o:o + 1, :]           # (SB, O)

        # softmax(dim=1), numerically stable; divide via EUP reciprocal + one
        # Newton step (restores full f32 precision, keeps the VALU slot free).
        m = jnp.max(logits, axis=1, keepdims=True)
        e = jnp.exp(logits - m)
        ssum = jnp.sum(e, axis=1, keepdims=True)
        r = pl.reciprocal(ssum, approx=True)
        r = r * (2.0 - ssum * r)
        out_ref[pl.ds(row, strip), :] = e * r


def _round_up(x, m):
    return ((x + m - 1) // m) * m


def perfect_ar_model_forward(x_nchw, conv_w, fc_w, fc_b, *, batch_tile=128):
    """PerfectARModel.forward (post_pooling_output=False) via a Pallas kernel."""
    x_nchw = x_nchw.astype(jnp.float32)
    B, C, H, W = x_nchw.shape
    O, Cw, kh, kw = conv_w.shape
    assert C == Cw and (kh, kw) == (2, 2)
    Ho, Wo = H - kh + 1, W - kw + 1          # conv output map (expected 30x30)
    HW = H * W                               # 961
    PV = (Ho - 1) * W + Wo                   # flattened span covering valid outputs (929)
    SB = 8                                   # in-kernel batch strip (sublane granule)

    # Channel-fold guard: only valid because the module replicates each 2x2
    # filter across the 3 input channels (build_params guarantees this).
    cw = np.asarray(conv_w, dtype=np.float32)                     # (O, C, 2, 2)
    assert np.array_equal(cw, np.broadcast_to(cw[:, :1], cw.shape)), \
        "channel fold requires conv filters replicated across input channels"
    w_fold = jnp.asarray(cw[:, 0].reshape(O * kh * kw))           # (40,), (o, di, dj)

    # channels-major with spatial flattened on the lane axis: (C, B, HW)
    x_cbp = jnp.transpose(x_nchw.reshape(B, C, HW), (1, 0, 2))

    # Validity mask over flattened output index p: column j = p % W must be < Wo.
    cols = np.arange(PV) % W
    mask = jnp.asarray((cols < Wo).astype(np.float32)).reshape(1, PV)

    fcwT = fc_w.T.astype(jnp.float32)                             # (10, 10) (in, out)
    fcb = fc_b.reshape(1, O).astype(jnp.float32)                  # (1, 10)

    # Batch tiling: pad B to the 8-row strip granule; for B > 16 pick a tile
    # giving the "parallel" batch grid >= 2 steps (both TensorCores on v7x),
    # capped at batch_tile.  VMEM at TB=128: ~1.5 MB x2 input — fits defaults.
    batch_tile = _round_up(batch_tile, SB)
    Bp = _round_up(B, SB)
    TB = Bp if Bp <= 2 * SB else min(batch_tile, _round_up(pl.cdiv(Bp, 2), SB))
    Bp = _round_up(Bp, TB)
    if Bp != B:
        x_cbp = jnp.pad(x_cbp, ((0, 0), (0, Bp - B), (0, 0)))
    grid = (Bp // TB,)

    kernel = functools.partial(ar_kernel, img_w=W, pv=PV, n_cin=C, strip=SB)

    taps = kh * kw
    cost = pl.CostEstimate(
        flops=2 * Bp * PV * taps * O + 2 * Bp * O * O,
        transcendentals=Bp * O,
        bytes_accessed=Bp * C * HW * 4 + Bp * O * 4
                       + (PV + O * O + O + int(w_fold.size)) * 4,
    )

    out = pl.pallas_call(
        kernel,
        out_shape=jax.ShapeDtypeStruct((Bp, O), jnp.float32),
        grid_spec=pltpu.PrefetchScalarGridSpec(
            num_scalar_prefetch=0,
            grid=grid,
            in_specs=[
                pl.BlockSpec((C, TB, HW), lambda i: (0, i, 0)),
                pl.BlockSpec((1, PV), lambda i: (0, 0)),
                pl.BlockSpec(memory_space=pltpu.MemorySpace.SMEM),
                pl.BlockSpec((O, O), lambda i: (0, 0)),
                pl.BlockSpec((1, O), lambda i: (0, 0)),
            ],
            out_specs=pl.BlockSpec((TB, O), lambda i: (i, 0)),
        ),
        compiler_params=pltpu.CompilerParams(
            dimension_semantics=("parallel",)),
        cost_estimate=cost,
    )(x_cbp, mask, w_fold, fcwT, fcb)
    return out[:B]


# ---------------------------------------------------------------------------
# Pure-JAX reference (for correctness check)
# ---------------------------------------------------------------------------
def reference_forward(x_nchw, conv_w, fc_w, fc_b):
    conv = lax.conv_general_dilated(
        x_nchw.astype(jnp.float32), conv_w.astype(jnp.float32),
        window_strides=(1, 1), padding="VALID",
        dimension_numbers=("NCHW", "OIHW", "NCHW"))            # (B, 10, 30, 30)
    conv = jnp.maximum(conv, 0.0)
    pooled = jnp.max(conv, axis=(2, 3))                        # MaxPool2d(30) -> (B, 10)
    logits = pooled @ fc_w.T + fc_b                            # Linear(10, 10)
    return jax.nn.softmax(logits, axis=1)


if __name__ == "__main__":
    key = jax.random.PRNGKey(0)
    # Input consistent with the module: 3 channels, 31x31 so the (assigned)
    # 2x2 conv gives a 30x30 map which MaxPool2d(kernel_size=30) reduces to 1x1.
    x = jax.random.normal(key, (2, 3, 31, 31), dtype=jnp.float32)

    conv_w, fc_w, fc_b = build_params()

    out = perfect_ar_model_forward(x, conv_w, fc_w, fc_b)
    out = jax.block_until_ready(out)

    ref = jax.block_until_ready(reference_forward(x, conv_w, fc_w, fc_b))
    assert out.shape == (2, 10)
    np.testing.assert_allclose(np.asarray(out), np.asarray(ref),
                               rtol=1e-4, atol=5e-5)
    print("KERNEL_OK")
</pallas_src>

<mosaic_0001>
module attributes {stable_mosaic.version = 11 : i64} {
  func.func @ar_kernel(%arg0: i32, %arg1: memref<3x8x961xf32, #tpu.memory_space<vmem>>, %arg2: memref<1x929xf32, #tpu.memory_space<vmem>>, %arg3: memref<40xf32, #tpu.memory_space<smem>>, %arg4: memref<10x10xf32, #tpu.memory_space<vmem>>, %arg5: memref<1x10xf32, #tpu.memory_space<vmem>>, %arg6: memref<8x10xf32, #tpu.memory_space<vmem>>) attributes {dimension_semantics = [#tpu.dimension_semantics<parallel>], iteration_bounds = array<i64: 1>, scalar_prefetch = 0 : i64, scratch_operands = 0 : i64, tpu.core_type = #tpu.core_type<tc>, window_params = [{transform_indices = @transform_0, window_bounds = array<i64: 3, 8, 961>}, {pipeline_mode = #tpu.pipeline_mode<synchronous>, transform_indices = @transform_1, window_bounds = array<i64: 1, 929>}, {transform_indices = @transform_2, window_bounds = array<i64: 40>}, {pipeline_mode = #tpu.pipeline_mode<synchronous>, transform_indices = @transform_3, window_bounds = array<i64: 10, 10>}, {pipeline_mode = #tpu.pipeline_mode<synchronous>, transform_indices = @transform_4, window_bounds = array<i64: 1, 10>}, {transform_indices = @transform_5, window_bounds = array<i64: 8, 10>}]} {
    %c0 = arith.constant 0 : index
    %c0_0 = arith.constant 0 : index
    %0 = vector.load %arg2[%c0, %c0_0] : memref<1x929xf32, #tpu.memory_space<vmem>>, vector<1x929xf32>
    %cst = arith.constant 5.000000e-01 : f32
    %1 = vector.broadcast %cst : f32 to vector<1x929xf32>
    %2 = arith.cmpf ogt, %0, %1 : vector<1x929xf32>
    %3 = vector.shape_cast %2 : vector<1x929xi1> to vector<1x929xi1>
    %4 = vector.broadcast %3 : vector<1x929xi1> to vector<8x929xi1>
    %c0_1 = arith.constant 0 : index
    %c0_2 = arith.constant 0 : index
    %5 = vector.load %arg4[%c0_1, %c0_2] : memref<10x10xf32, #tpu.memory_space<vmem>>, vector<10x10xf32>
    %c0_3 = arith.constant 0 : index
    %c0_4 = arith.constant 0 : index
    %6 = vector.load %arg5[%c0_3, %c0_4] : memref<1x10xf32, #tpu.memory_space<vmem>>, vector<1x10xf32>
    %7 = vector.shape_cast %6 : vector<1x10xf32> to vector<1x10xf32>
    %8 = vector.broadcast %7 : vector<1x10xf32> to vector<8x10xf32>
    %cst_5 = arith.constant 0xFF800000 : f32
    %c0_i32 = arith.constant 0 : i32
    %c1_i32 = arith.constant 1 : i32
    %9 = arith.muli %c0_i32, %c1_i32 : i32
    %c0_i32_6 = arith.constant 0 : i32
    %10 = arith.addi %c0_i32_6, %9 : i32
    %c8_i32 = arith.constant 8 : i32
    %11 = arith.muli %10, %c8_i32 : i32
    %12 = tpu.assume_multiple %11, 8 : i32
    %c0_7 = arith.constant 0 : index
    %13 = arith.index_cast %12 : i32 to index
    %c0_8 = arith.constant 0 : index
    %14 = vector.load %arg1[%c0_7, %13, %c0_8] : memref<3x8x961xf32, #tpu.memory_space<vmem>>, vector<1x8x961xf32>
    %15 = vector.shape_cast %14 : vector<1x8x961xf32> to vector<8x961xf32>
    %c1 = arith.constant 1 : index
    %16 = arith.index_cast %12 : i32 to index
    %c0_9 = arith.constant 0 : index
    %17 = vector.load %arg1[%c1, %16, %c0_9] : memref<3x8x961xf32, #tpu.memory_space<vmem>>, vector<1x8x961xf32>
    %18 = vector.shape_cast %17 : vector<1x8x961xf32> to vector<8x961xf32>
    %19 = arith.addf %15, %18 : vector<8x961xf32>
    %c2 = arith.constant 2 : index
    %20 = arith.index_cast %12 : i32 to index
    %c0_10 = arith.constant 0 : index
    %21 = vector.load %arg1[%c2, %20, %c0_10] : memref<3x8x961xf32, #tpu.memory_space<vmem>>, vector<1x8x961xf32>
    %22 = vector.shape_cast %21 : vector<1x8x961xf32> to vector<8x961xf32>
    %23 = arith.addf %19, %22 : vector<8x961xf32>
    %24 = vector.extract_strided_slice %23 {offsets = [0, 0], sizes = [8, 929], strides = [1, 1]} : vector<8x961xf32> to vector<8x929xf32>
    %25 = vector.extract_strided_slice %23 {offsets = [0, 1], sizes = [8, 929], strides = [1, 1]} : vector<8x961xf32> to vector<8x929xf32>
    %26 = vector.extract_strided_slice %23 {offsets = [0, 31], sizes = [8, 929], strides = [1, 1]} : vector<8x961xf32> to vector<8x929xf32>
    %27 = vector.extract_strided_slice %23 {offsets = [0, 32], sizes = [8, 929], strides = [1, 1]} : vector<8x961xf32> to vector<8x929xf32>
    %c0_11 = arith.constant 0 : index
    %28 = memref.load %arg3[%c0_11] : memref<40xf32, #tpu.memory_space<smem>>
    %29 = vector.broadcast %28 : f32 to vector<8x929xf32>
    %30 = arith.mulf %24, %29 : vector<8x929xf32>
    %c1_12 = arith.constant 1 : index
    %31 = memref.load %arg3[%c1_12] : memref<40xf32, #tpu.memory_space<smem>>
    %32 = vector.broadcast %31 : f32 to vector<8x929xf32>
    %33 = arith.mulf %25, %32 : vector<8x929xf32>
    %34 = arith.addf %30, %33 : vector<8x929xf32>
    %c2_13 = arith.constant 2 : index
    %35 = memref.load %arg3[%c2_13] : memref<40xf32, #tpu.memory_space<smem>>
    %36 = vector.broadcast %35 : f32 to vector<8x929xf32>
    %37 = arith.mulf %26, %36 : vector<8x929xf32>
    %38 = arith.addf %34, %37 : vector<8x929xf32>
    %c3 = arith.constant 3 : index
    %39 = memref.load %arg3[%c3] : memref<40xf32, #tpu.memory_space<smem>>
    %40 = vector.broadcast %39 : f32 to vector<8x929xf32>
    %41 = arith.mulf %27, %40 : vector<8x929xf32>
    %42 = arith.addf %38, %41 : vector<8x929xf32>
    %43 = vector.broadcast %cst_5 : f32 to vector<8x929xf32>
    %44 = arith.select %4, %42, %43 : vector<8x929xi1>, vector<8x929xf32>
    %cst_14 = arith.constant dense<0xFF800000> : vector<8xf32>
    %45 = vector.multi_reduction <maximumf>, %44, %cst_14 [1] : vector<8x929xf32> to vector<8xf32>
    %46 = vector.shape_cast %45 : vector<8xf32> to vector<8x1xf32>
    %cst_15 = arith.constant 0.000000e+00 : f32
    %47 = vector.broadcast %cst_15 : f32 to vector<8x1xf32>
    %48 = arith.maximumf %46, %47 : vector<8x1xf32>
    %49 = vector.extract_strided_slice %5 {offsets = [0, 0], sizes = [1, 10], strides = [1, 1]} : vector<10x10xf32> to vector<1x10xf32>
    %50 = vector.broadcast %48 : vector<8x1xf32> to vector<8x10xf32>
    %51 = vector.broadcast %49 : vector<1x10xf32> to vector<8x10xf32>
    %52 = arith.mulf %50, %51 : vector<8x10xf32>
    %53 = arith.addf %8, %52 : vector<8x10xf32>
    %c4 = arith.constant 4 : index
    %54 = memref.load %arg3[%c4] : memref<40xf32, #tpu.memory_space<smem>>
    %55 = vector.broadcast %54 : f32 to vector<8x929xf32>
    %56 = arith.mulf %24, %55 : vector<8x929xf32>
    %c5 = arith.constant 5 : index
    %57 = memref.load %arg3[%c5] : memref<40xf32, #tpu.memory_space<smem>>
    %58 = vector.broadcast %57 : f32 to vector<8x929xf32>
    %59 = arith.mulf %25, %58 : vector<8x929xf32>
    %60 = arith.addf %56, %59 : vector<8x929xf32>
    %c6 = arith.constant 6 : index
    %61 = memref.load %arg3[%c6] : memref<40xf32, #tpu.memory_space<smem>>
    %62 = vector.broadcast %61 : f32 to vector<8x929xf32>
    %63 = arith.mulf %26, %62 : vector<8x929xf32>
    %64 = arith.addf %60, %63 : vector<8x929xf32>
    %c7 = arith.constant 7 : index
    %65 = memref.load %arg3[%c7] : memref<40xf32, #tpu.memory_space<smem>>
    %66 = vector.broadcast %65 : f32 to vector<8x929xf32>
    %67 = arith.mulf %27, %66 : vector<8x929xf32>
    %68 = arith.addf %64, %67 : vector<8x929xf32>
    %69 = vector.broadcast %cst_5 : f32 to vector<8x929xf32>
    %70 = arith.select %4, %68, %69 : vector<8x929xi1>, vector<8x929xf32>
    %cst_16 = arith.constant dense<0xFF800000> : vector<8xf32>
    %71 = vector.multi_reduction <maximumf>, %70, %cst_16 [1] : vector<8x929xf32> to vector<8xf32>
    %72 = vector.shape_cast %71 : vector<8xf32> to vector<8x1xf32>
    %cst_17 = arith.constant 0.000000e+00 : f32
    %73 = vector.broadcast %cst_17 : f32 to vector<8x1xf32>
    %74 = arith.maximumf %72, %73 : vector<8x1xf32>
    %75 = vector.extract_strided_slice %5 {offsets = [1, 0], sizes = [1, 10], strides = [1, 1]} : vector<10x10xf32> to vector<1x10xf32>
    %76 = vector.broadcast %74 : vector<8x1xf32> to vector<8x10xf32>
    %77 = vector.broadcast %75 : vector<1x10xf32> to vector<8x10xf32>
    %78 = arith.mulf %76, %77 : vector<8x10xf32>
    %79 = arith.addf %53, %78 : vector<8x10xf32>
    %c8 = arith.constant 8 : index
    %80 = memref.load %arg3[%c8] : memref<40xf32, #tpu.memory_space<smem>>
    %81 = vector.broadcast %80 : f32 to vector<8x929xf32>
    %82 = arith.mulf %24, %81 : vector<8x929xf32>
    %c9 = arith.constant 9 : index
    %83 = memref.load %arg3[%c9] : memref<40xf32, #tpu.memory_space<smem>>
    %84 = vector.broadcast %83 : f32 to vector<8x929xf32>
    %85 = arith.mulf %25, %84 : vector<8x929xf32>
    %86 = arith.addf %82, %85 : vector<8x929xf32>
    %c10 = arith.constant 10 : index
    %87 = memref.load %arg3[%c10] : memref<40xf32, #tpu.memory_space<smem>>
    %88 = vector.broadcast %87 : f32 to vector<8x929xf32>
    %89 = arith.mulf %26, %88 : vector<8x929xf32>
    %90 = arith.addf %86, %89 : vector<8x929xf32>
    %c11 = arith.constant 11 : index
    %91 = memref.load %arg3[%c11] : memref<40xf32, #tpu.memory_space<smem>>
    %92 = vector.broadcast %91 : f32 to vector<8x929xf32>
    %93 = arith.mulf %27, %92 : vector<8x929xf32>
    %94 = arith.addf %90, %93 : vector<8x929xf32>
    %95 = vector.broadcast %cst_5 : f32 to vector<8x929xf32>
    %96 = arith.select %4, %94, %95 : vector<8x929xi1>, vector<8x929xf32>
    %cst_18 = arith.constant dense<0xFF800000> : vector<8xf32>
    %97 = vector.multi_reduction <maximumf>, %96, %cst_18 [1] : vector<8x929xf32> to vector<8xf32>
    %98 = vector.shape_cast %97 : vector<8xf32> to vector<8x1xf32>
    %cst_19 = arith.constant 0.000000e+00 : f32
    %99 = vector.broadcast %cst_19 : f32 to vector<8x1xf32>
    %100 = arith.maximumf %98, %99 : vector<8x1xf32>
    %101 = vector.extract_strided_slice %5 {offsets = [2, 0], sizes = [1, 10], strides = [1, 1]} : vector<10x10xf32> to vector<1x10xf32>
    %102 = vector.broadcast %100 : vector<8x1xf32> to vector<8x10xf32>
    %103 = vector.broadcast %101 : vector<1x10xf32> to vector<8x10xf32>
    %104 = arith.mulf %102, %103 : vector<8x10xf32>
    %105 = arith.addf %79, %104 : vector<8x10xf32>
    %c12 = arith.constant 12 : index
    %106 = memref.load %arg3[%c12] : memref<40xf32, #tpu.memory_space<smem>>
    %107 = vector.broadcast %106 : f32 to vector<8x929xf32>
    %108 = arith.mulf %24, %107 : vector<8x929xf32>
    %c13 = arith.constant 13 : index
    %109 = memref.load %arg3[%c13] : memref<40xf32, #tpu.memory_space<smem>>
    %110 = vector.broadcast %109 : f32 to vector<8x929xf32>
    %111 = arith.mulf %25, %110 : vector<8x929xf32>
    %112 = arith.addf %108, %111 : vector<8x929xf32>
    %c14 = arith.constant 14 : index
    %113 = memref.load %arg3[%c14] : memref<40xf32, #tpu.memory_space<smem>>
    %114 = vector.broadcast %113 : f32 to vector<8x929xf32>
    %115 = arith.mulf %26, %114 : vector<8x929xf32>
    %116 = arith.addf %112, %115 : vector<8x929xf32>
    %c15 = arith.constant 15 : index
    %117 = memref.load %arg3[%c15] : memref<40xf32, #tpu.memory_space<smem>>
    %118 = vector.broadcast %117 : f32 to vector<8x929xf32>
    %119 = arith.mulf %27, %118 : vector<8x929xf32>
    %120 = arith.addf %116, %119 : vector<8x929xf32>
    %121 = vector.broadcast %cst_5 : f32 to vector<8x929xf32>
    %122 = arith.select %4, %120, %121 : vector<8x929xi1>, vector<8x929xf32>
    %cst_20 = arith.constant dense<0xFF800000> : vector<8xf32>
    %123 = vector.multi_reduction <maximumf>, %122, %cst_20 [1] : vector<8x929xf32> to vector<8xf32>
    %124 = vector.shape_cast %123 : vector<8xf32> to vector<8x1xf32>
    %cst_21 = arith.constant 0.000000e+00 : f32
    %125 = vector.broadcast %cst_21 : f32 to vector<8x1xf32>
    %126 = arith.maximumf %124, %125 : vector<8x1xf32>
    %127 = vector.extract_strided_slice %5 {offsets = [3, 0], sizes = [1, 10], strides = [1, 1]} : vector<10x10xf32> to vector<1x10xf32>
    %128 = vector.broadcast %126 : vector<8x1xf32> to vector<8x10xf32>
    %129 = vector.broadcast %127 : vector<1x10xf32> to vector<8x10xf32>
    %130 = arith.mulf %128, %129 : vector<8x10xf32>
    %131 = arith.addf %105, %130 : vector<8x10xf32>
    %c16 = arith.constant 16 : index
    %132 = memref.load %arg3[%c16] : memref<40xf32, #tpu.memory_space<smem>>
    %133 = vector.broadcast %132 : f32 to vector<8x929xf32>
    %134 = arith.mulf %24, %133 : vector<8x929xf32>
    %c17 = arith.constant 17 : index
    %135 = memref.load %arg3[%c17] : memref<40xf32, #tpu.memory_space<smem>>
    %136 = vector.broadcast %135 : f32 to vector<8x929xf32>
    %137 = arith.mulf %25, %136 : vector<8x929xf32>
    %138 = arith.addf %134, %137 : vector<8x929xf32>
    %c18 = arith.constant 18 : index
    %139 = memref.load %arg3[%c18] : memref<40xf32, #tpu.memory_space<smem>>
    %140 = vector.broadcast %139 : f32 to vector<8x929xf32>
    %141 = arith.mulf %26, %140 : vector<8x929xf32>
    %142 = arith.addf %138, %141 : vector<8x929xf32>
    %c19 = arith.constant 19 : index
    %143 = memref.load %arg3[%c19] : memref<40xf32, #tpu.memory_space<smem>>
    %144 = vector.broadcast %143 : f32 to vector<8x929xf32>
    %145 = arith.mulf %27, %144 : vector<8x929xf32>
    %146 = arith.addf %142, %145 : vector<8x929xf32>
    %147 = vector.broadcast %cst_5 : f32 to vector<8x929xf32>
    %148 = arith.select %4, %146, %147 : vector<8x929xi1>, vector<8x929xf32>
    %cst_22 = arith.constant dense<0xFF800000> : vector<8xf32>
    %149 = vector.multi_reduction <maximumf>, %148, %cst_22 [1] : vector<8x929xf32> to vector<8xf32>
    %150 = vector.shape_cast %149 : vector<8xf32> to vector<8x1xf32>
    %cst_23 = arith.constant 0.000000e+00 : f32
    %151 = vector.broadcast %cst_23 : f32 to vector<8x1xf32>
    %152 = arith.maximumf %150, %151 : vector<8x1xf32>
    %153 = vector.extract_strided_slice %5 {offsets = [4, 0], sizes = [1, 10], strides = [1, 1]} : vector<10x10xf32> to vector<1x10xf32>
    %154 = vector.broadcast %152 : vector<8x1xf32> to vector<8x10xf32>
    %155 = vector.broadcast %153 : vector<1x10xf32> to vector<8x10xf32>
    %156 = arith.mulf %154, %155 : vector<8x10xf32>
    %157 = arith.addf %131, %156 : vector<8x10xf32>
    %c20 = arith.constant 20 : index
    %158 = memref.load %arg3[%c20] : memref<40xf32, #tpu.memory_space<smem>>
    %159 = vector.broadcast %158 : f32 to vector<8x929xf32>
    %160 = arith.mulf %24, %159 : vector<8x929xf32>
    %c21 = arith.constant 21 : index
    %161 = memref.load %arg3[%c21] : memref<40xf32, #tpu.memory_space<smem>>
    %162 = vector.broadcast %161 : f32 to vector<8x929xf32>
    %163 = arith.mulf %25, %162 : vector<8x929xf32>
    %164 = arith.addf %160, %163 : vector<8x929xf32>
    %c22 = arith.constant 22 : index
    %165 = memref.load %arg3[%c22] : memref<40xf32, #tpu.memory_space<smem>>
    %166 = vector.broadcast %165 : f32 to vector<8x929xf32>
    %167 = arith.mulf %26, %166 : vector<8x929xf32>
    %168 = arith.addf %164, %167 : vector<8x929xf32>
    %c23 = arith.constant 23 : index
    %169 = memref.load %arg3[%c23] : memref<40xf32, #tpu.memory_space<smem>>
    %170 = vector.broadcast %169 : f32 to vector<8x929xf32>
    %171 = arith.mulf %27, %170 : vector<8x929xf32>
    %172 = arith.addf %168, %171 : vector<8x929xf32>
    %173 = vector.broadcast %cst_5 : f32 to vector<8x929xf32>
    %174 = arith.select %4, %172, %173 : vector<8x929xi1>, vector<8x929xf32>
    %cst_24 = arith.constant dense<0xFF800000> : vector<8xf32>
    %175 = vector.multi_reduction <maximumf>, %174, %cst_24 [1] : vector<8x929xf32> to vector<8xf32>
    %176 = vector.shape_cast %175 : vector<8xf32> to vector<8x1xf32>
    %cst_25 = arith.constant 0.000000e+00 : f32
    %177 = vector.broadcast %cst_25 : f32 to vector<8x1xf32>
    %178 = arith.maximumf %176, %177 : vector<8x1xf32>
    %179 = vector.extract_strided_slice %5 {offsets = [5, 0], sizes = [1, 10], strides = [1, 1]} : vector<10x10xf32> to vector<1x10xf32>
    %180 = vector.broadcast %178 : vector<8x1xf32> to vector<8x10xf32>
    %181 = vector.broadcast %179 : vector<1x10xf32> to vector<8x10xf32>
    %182 = arith.mulf %180, %181 : vector<8x10xf32>
    %183 = arith.addf %157, %182 : vector<8x10xf32>
    %c24 = arith.constant 24 : index
    %184 = memref.load %arg3[%c24] : memref<40xf32, #tpu.memory_space<smem>>
    %185 = vector.broadcast %184 : f32 to vector<8x929xf32>
    %186 = arith.mulf %24, %185 : vector<8x929xf32>
    %c25 = arith.constant 25 : index
    %187 = memref.load %arg3[%c25] : memref<40xf32, #tpu.memory_space<smem>>
    %188 = vector.broadcast %187 : f32 to vector<8x929xf32>
    %189 = arith.mulf %25, %188 : vector<8x929xf32>
    %190 = arith.addf %186, %189 : vector<8x929xf32>
    %c26 = arith.constant 26 : index
    %191 = memref.load %arg3[%c26] : memref<40xf32, #tpu.memory_space<smem>>
    %192 = vector.broadcast %191 : f32 to vector<8x929xf32>
    %193 = arith.mulf %26, %192 : vector<8x929xf32>
    %194 = arith.addf %190, %193 : vector<8x929xf32>
    %c27 = arith.constant 27 : index
    %195 = memref.load %arg3[%c27] : memref<40xf32, #tpu.memory_space<smem>>
    %196 = vector.broadcast %195 : f32 to vector<8x929xf32>
    %197 = arith.mulf %27, %196 : vector<8x929xf32>
    %198 = arith.addf %194, %197 : vector<8x929xf32>
    %199 = vector.broadcast %cst_5 : f32 to vector<8x929xf32>
    %200 = arith.select %4, %198, %199 : vector<8x929xi1>, vector<8x929xf32>
    %cst_26 = arith.constant dense<0xFF800000> : vector<8xf32>
    %201 = vector.multi_reduction <maximumf>, %200, %cst_26 [1] : vector<8x929xf32> to vector<8xf32>
    %202 = vector.shape_cast %201 : vector<8xf32> to vector<8x1xf32>
    %cst_27 = arith.constant 0.000000e+00 : f32
    %203 = vector.broadcast %cst_27 : f32 to vector<8x1xf32>
    %204 = arith.maximumf %202, %203 : vector<8x1xf32>
    %205 = vector.extract_strided_slice %5 {offsets = [6, 0], sizes = [1, 10], strides = [1, 1]} : vector<10x10xf32> to vector<1x10xf32>
    %206 = vector.broadcast %204 : vector<8x1xf32> to vector<8x10xf32>
    %207 = vector.broadcast %205 : vector<1x10xf32> to vector<8x10xf32>
    %208 = arith.mulf %206, %207 : vector<8x10xf32>
    %209 = arith.addf %183, %208 : vector<8x10xf32>
    %c28 = arith.constant 28 : index
    %210 = memref.load %arg3[%c28] : memref<40xf32, #tpu.memory_space<smem>>
    %211 = vector.broadcast %210 : f32 to vector<8x929xf32>
    %212 = arith.mulf %24, %211 : vector<8x929xf32>
    %c29 = arith.constant 29 : index
    %213 = memref.load %arg3[%c29] : memref<40xf32, #tpu.memory_space<smem>>
    %214 = vector.broadcast %213 : f32 to vector<8x929xf32>
    %215 = arith.mulf %25, %214 : vector<8x929xf32>
    %216 = arith.addf %212, %215 : vector<8x929xf32>
    %c30 = arith.constant 30 : index
    %217 = memref.load %arg3[%c30] : memref<40xf32, #tpu.memory_space<smem>>
    %218 = vector.broadcast %217 : f32 to vector<8x929xf32>
    %219 = arith.mulf %26, %218 : vector<8x929xf32>
    %220 = arith.addf %216, %219 : vector<8x929xf32>
    %c31 = arith.constant 31 : index
    %221 = memref.load %arg3[%c31] : memref<40xf32, #tpu.memory_space<smem>>
    %222 = vector.broadcast %221 : f32 to vector<8x929xf32>
    %223 = arith.mulf %27, %222 : vector<8x929xf32>
    %224 = arith.addf %220, %223 : vector<8x929xf32>
    %225 = vector.broadcast %cst_5 : f32 to vector<8x929xf32>
    %226 = arith.select %4, %224, %225 : vector<8x929xi1>, vector<8x929xf32>
    %cst_28 = arith.constant dense<0xFF800000> : vector<8xf32>
    %227 = vector.multi_reduction <maximumf>, %226, %cst_28 [1] : vector<8x929xf32> to vector<8xf32>
    %228 = vector.shape_cast %227 : vector<8xf32> to vector<8x1xf32>
    %cst_29 = arith.constant 0.000000e+00 : f32
    %229 = vector.broadcast %cst_29 : f32 to vector<8x1xf32>
    %230 = arith.maximumf %228, %229 : vector<8x1xf32>
    %231 = vector.extract_strided_slice %5 {offsets = [7, 0], sizes = [1, 10], strides = [1, 1]} : vector<10x10xf32> to vector<1x10xf32>
    %232 = vector.broadcast %230 : vector<8x1xf32> to vector<8x10xf32>
    %233 = vector.broadcast %231 : vector<1x10xf32> to vector<8x10xf32>
    %234 = arith.mulf %232, %233 : vector<8x10xf32>
    %235 = arith.addf %209, %234 : vector<8x10xf32>
    %c32 = arith.constant 32 : index
    %236 = memref.load %arg3[%c32] : memref<40xf32, #tpu.memory_space<smem>>
    %237 = vector.broadcast %236 : f32 to vector<8x929xf32>
    %238 = arith.mulf %24, %237 : vector<8x929xf32>
    %c33 = arith.constant 33 : index
    %239 = memref.load %arg3[%c33] : memref<40xf32, #tpu.memory_space<smem>>
    %240 = vector.broadcast %239 : f32 to vector<8x929xf32>
    %241 = arith.mulf %25, %240 : vector<8x929xf32>
    %242 = arith.addf %238, %241 : vector<8x929xf32>
    %c34 = arith.constant 34 : index
    %243 = memref.load %arg3[%c34] : memref<40xf32, #tpu.memory_space<smem>>
    %244 = vector.broadcast %243 : f32 to vector<8x929xf32>
    %245 = arith.mulf %26, %244 : vector<8x929xf32>
    %246 = arith.addf %242, %245 : vector<8x929xf32>
    %c35 = arith.constant 35 : index
    %247 = memref.load %arg3[%c35] : memref<40xf32, #tpu.memory_space<smem>>
    %248 = vector.broadcast %247 : f32 to vector<8x929xf32>
    %249 = arith.mulf %27, %248 : vector<8x929xf32>
    %250 = arith.addf %246, %249 : vector<8x929xf32>
    %251 = vector.broadcast %cst_5 : f32 to vector<8x929xf32>
    %252 = arith.select %4, %250, %251 : vector<8x929xi1>, vector<8x929xf32>
    %cst_30 = arith.constant dense<0xFF800000> : vector<8xf32>
    %253 = vector.multi_reduction <maximumf>, %252, %cst_30 [1] : vector<8x929xf32> to vector<8xf32>
    %254 = vector.shape_cast %253 : vector<8xf32> to vector<8x1xf32>
    %cst_31 = arith.constant 0.000000e+00 : f32
    %255 = vector.broadcast %cst_31 : f32 to vector<8x1xf32>
    %256 = arith.maximumf %254, %255 : vector<8x1xf32>
    %257 = vector.extract_strided_slice %5 {offsets = [8, 0], sizes = [1, 10], strides = [1, 1]} : vector<10x10xf32> to vector<1x10xf32>
    %258 = vector.broadcast %256 : vector<8x1xf32> to vector<8x10xf32>
    %259 = vector.broadcast %257 : vector<1x10xf32> to vector<8x10xf32>
    %260 = arith.mulf %258, %259 : vector<8x10xf32>
    %261 = arith.addf %235, %260 : vector<8x10xf32>
    %c36 = arith.constant 36 : index
    %262 = memref.load %arg3[%c36] : memref<40xf32, #tpu.memory_space<smem>>
    %263 = vector.broadcast %262 : f32 to vector<8x929xf32>
    %264 = arith.mulf %24, %263 : vector<8x929xf32>
    %c37 = arith.constant 37 : index
    %265 = memref.load %arg3[%c37] : memref<40xf32, #tpu.memory_space<smem>>
    %266 = vector.broadcast %265 : f32 to vector<8x929xf32>
    %267 = arith.mulf %25, %266 : vector<8x929xf32>
    %268 = arith.addf %264, %267 : vector<8x929xf32>
    %c38 = arith.constant 38 : index
    %269 = memref.load %arg3[%c38] : memref<40xf32, #tpu.memory_space<smem>>
    %270 = vector.broadcast %269 : f32 to vector<8x929xf32>
    %271 = arith.mulf %26, %270 : vector<8x929xf32>
    %272 = arith.addf %268, %271 : vector<8x929xf32>
    %c39 = arith.constant 39 : index
    %273 = memref.load %arg3[%c39] : memref<40xf32, #tpu.memory_space<smem>>
    %274 = vector.broadcast %273 : f32 to vector<8x929xf32>
    %275 = arith.mulf %27, %274 : vector<8x929xf32>
    %276 = arith.addf %272, %275 : vector<8x929xf32>
    %277 = vector.broadcast %cst_5 : f32 to vector<8x929xf32>
    %278 = arith.select %4, %276, %277 : vector<8x929xi1>, vector<8x929xf32>
    %cst_32 = arith.constant dense<0xFF800000> : vector<8xf32>
    %279 = vector.multi_reduction <maximumf>, %278, %cst_32 [1] : vector<8x929xf32> to vector<8xf32>
    %280 = vector.shape_cast %279 : vector<8xf32> to vector<8x1xf32>
    %cst_33 = arith.constant 0.000000e+00 : f32
    %281 = vector.broadcast %cst_33 : f32 to vector<8x1xf32>
    %282 = arith.maximumf %280, %281 : vector<8x1xf32>
    %283 = vector.extract_strided_slice %5 {offsets = [9, 0], sizes = [1, 10], strides = [1, 1]} : vector<10x10xf32> to vector<1x10xf32>
    %284 = vector.broadcast %282 : vector<8x1xf32> to vector<8x10xf32>
    %285 = vector.broadcast %283 : vector<1x10xf32> to vector<8x10xf32>
    %286 = arith.mulf %284, %285 : vector<8x10xf32>
    %287 = arith.addf %261, %286 : vector<8x10xf32>
    %cst_34 = arith.constant dense<0xFF800000> : vector<8xf32>
    %288 = vector.multi_reduction <maximumf>, %287, %cst_34 [1] : vector<8x10xf32> to vector<8xf32>
    %289 = vector.shape_cast %288 : vector<8xf32> to vector<8x1xf32>
    %290 = vector.broadcast %289 : vector<8x1xf32> to vector<8x10xf32>
    %291 = arith.subf %287, %290 : vector<8x10xf32>
    %292 = math.exp %291 : vector<8x10xf32>
    %cst_35 = arith.constant dense<0.000000e+00> : vector<8xf32>
    %293 = vector.multi_reduction <add>, %292, %cst_35 [1] : vector<8x10xf32> to vector<8xf32>
    %294 = vector.shape_cast %293 : vector<8xf32> to vector<8x1xf32>
    %295 = tpu.reciprocal %294 {approx = true} : vector<8x1xf32> -> vector<8x1xf32>
    %296 = arith.mulf %294, %295 : vector<8x1xf32>
    %cst_36 = arith.constant 2.000000e+00 : f32
    %297 = vector.broadcast %cst_36 : f32 to vector<8x1xf32>
    %298 = arith.subf %297, %296 : vector<8x1xf32>
    %299 = arith.mulf %295, %298 : vector<8x1xf32>
    %300 = vector.broadcast %299 : vector<8x1xf32> to vector<8x10xf32>
    %301 = arith.mulf %292, %300 : vector<8x10xf32>
    %302 = arith.index_cast %12 : i32 to index
    %c0_37 = arith.constant 0 : index
    %303 = vector.load %arg6[%302, %c0_37] : memref<8x10xf32, #tpu.memory_space<vmem>>, vector<8x10xf32>
    tpu.vector_store %arg6[%302, %c0_37], %301 {strides = array<i32>} : memref<8x10xf32, #tpu.memory_space<vmem>>, vector<8x10xf32>,
    %c1_i32_38 = arith.constant 1 : i32
    return
  }
  func.func @transform_0(%arg0: i32) -> (i32, i32, i32) {
    %c0_i32 = arith.constant 0 : i32
    %c0_i32_0 = arith.constant 0 : i32
    %c0_i32_1 = arith.constant 0 : i32
    return %c0_i32, %arg0, %c0_i32_0 : i32, i32, i32
  }
  func.func @transform_1(%arg0: i32) -> (i32, i32) {
    %c0_i32 = arith.constant 0 : i32
    %c0_i32_0 = arith.constant 0 : i32
    %c0_i32_1 = arith.constant 0 : i32
    return %c0_i32, %c0_i32_0 : i32, i32
  }
  func.func @transform_2(%arg0: i32) -> i32 {
    %c0_i32 = arith.constant 0 : i32
    %c0_i32_0 = arith.constant 0 : i32
    return %c0_i32 : i32
  }
  func.func @transform_3(%arg0: i32) -> (i32, i32) {
    %c0_i32 = arith.constant 0 : i32
    %c0_i32_0 = arith.constant 0 : i32
    %c0_i32_1 = arith.constant 0 : i32
    return %c0_i32, %c0_i32_0 : i32, i32
  }
  func.func @transform_4(%arg0: i32) -> (i32, i32) {
    %c0_i32 = arith.constant 0 : i32
    %c0_i32_0 = arith.constant 0 : i32
    %c0_i32_1 = arith.constant 0 : i32
    return %c0_i32, %c0_i32_0 : i32, i32
  }
  func.func @transform_5(%arg0: i32) -> (i32, i32) {
    %c0_i32 = arith.constant 0 : i32
    %c0_i32_0 = arith.constant 0 : i32
    return %arg0, %c0_i32 : i32, i32
  }
}

</mosaic_0001>

<llo_original>
// kernel: tpu_custom_call.1
$region0: #{tpu_custom_call.1}
  #allocation0 [shape = 'u32[]', space=smem, size = 0x4, offset = 0x4, fixed_abs, tag = 'smem constant byte address 0x4 - core index']
  #allocation1 [shape = 'u32[144,128]{1,0:T(1,128)}', space=vmem, size = 0x12000, scoped, tag = 'internal scratch']
  %s0 = inlined_call_operand.hbm [shape: f32[3,8,961], index: 0, kind: input, shape index: {}]
  %s1 = inlined_call_operand.hbm [shape: f32[1,929], index: 1, kind: input, shape index: {}]
  %s2 = inlined_call_operand.vmem [shape: f32[40], index: 2, kind: input, shape index: {}]
  %s3 = inlined_call_operand.hbm [shape: f32[10,10], index: 3, kind: input, shape index: {}]
  %s4 = inlined_call_operand.vmem [shape: f32[1,10], index: 4, kind: input, shape index: {}]
  %s5 = inlined_call_operand.hbm [shape: f32[8,10], index: 5, kind: output, shape index: {}]
  %s6 = sld [smem:[#allocation0]]
  $region46: #{tpu_custom_call.1} parent=0
    _
  %s8 = ssub.s32 1, %s6
  %s9 = scalar_select 0, %s8, %s6
  $region1: #{tpu_custom_call.1} parent=0
    #allocation2 [shape = 'u8[98304]{0}', space=vmem, size = 0x18000, scoped, tag = 'input window, operand 0, single buffered']
    #allocation3 [shape = 's32[1]{0}', space=sflag, size = 0x4, scoped, tag = 'scoped memory for tpu_custom_call.1']
    #allocation4 [shape = 's32[1]{0}', space=sflag, size = 0x4, scoped, tag = 'scoped memory for tpu_custom_call.1']
    #allocation5 [shape = 's32[1]{0}', space=sflag, size = 0x4, scoped, tag = 'scoped memory for tpu_custom_call.1']
    #allocation6 [shape = 'u8[4096]{0}', space=vmem, size = 0x1000, scoped, tag = 'input window, operand 1, single buffered']
    #allocation7 [shape = 's32[1]{0}', space=sflag, size = 0x4, scoped, tag = 'scoped memory for tpu_custom_call.1']
    #allocation8 [shape = 'u8[512]{0}', space=smem, size = 0x200, scoped, tag = 'input window, operand 2, single buffered']
    #allocation9 [shape = 'u8[8192]{0}', space=vmem, size = 0x2000, scoped, tag = 'input window, operand 3, single buffered']
    #allocation10 [shape = 'u8[4096]{0}', space=vmem, size = 0x1000, scoped, tag = 'output window, operand 0, single buffered']
    %10 = vsyncpa [#allocation3], 0
    %11 = vsyncpa [#allocation7], 0
    %12 = vsyncpa [#allocation5], 0
    %13 = vsyncpa [#allocation4], 0
    // Predicated region
    $region2: #{tpu_custom_call.1} parent=1 // pred_check
      _
    $region3: #{tpu_custom_call.1} parent=1 // pred_check_branch
      %15 = sbr.rel (0) target = $region5
    $region4: #{tpu_custom_call.1} parent=1 // pred_region
      %s17 = ssub.s32 3072, 3072
      %18 = vsyncadd [#allocation3], %s17
      %s19 = sshll.u32 [#allocation2], 4
      %s20 = int_to_ptr.vmem [resolvable:$true] %s19
      %25 = dma.hbm_to_vmem [thread:$0]  %s0, 3072, %s20, [#allocation3], 1024, 1024, 64
    $region5: #{tpu_custom_call.1} parent=1 // pred_fallthru
      _
    // Predicated region
    $region6: #{tpu_custom_call.1} parent=1 // pred_check
      _
    $region7: #{tpu_custom_call.1} parent=1 // pred_check_branch
      %27 = sbr.rel (0) target = $region9
    $region8: #{tpu_custom_call.1} parent=1 // pred_region
      %s29 = ssub.s32 128, 128
      %30 = vsyncadd [#allocation7], %s29
      %s32 = sshll.u32 [#allocation6], 4
      %s33 = int_to_ptr.vmem [resolvable:$true] %s32
      %35 = dma.hbm_to_vmem [thread:$0]  %s1, 128, %s33, [#allocation7]
    $region9: #{tpu_custom_call.1} parent=1 // pred_fallthru
      _
    // Predicated region
    $region10: #{tpu_custom_call.1} parent=1 // pred_check
      _
    $region11: #{tpu_custom_call.1} parent=1 // pred_check_branch
      %37 = sbr.rel (0) target = $region13
    $region12: #{tpu_custom_call.1} parent=1 // pred_region
      %s39 = ssub.s32 16, 16
      %40 = vsyncadd [#allocation5], %s39
      %s42 = sshll.u32 %s2, 4
      %s43 = int_to_ptr.vmem [resolvable:$true] %s42
      %45 = dma.vmem_to_smem %s43, 16, [#allocation8], [#allocation5]
    $region13: #{tpu_custom_call.1} parent=1 // pred_fallthru
      _
    // Predicated region
    $region14: #{tpu_custom_call.1} parent=1 // pred_check
      _
    $region15: #{tpu_custom_call.1} parent=1 // pred_check_branch
      %47 = sbr.rel (0) target = $region17
    $region16: #{tpu_custom_call.1} parent=1 // pred_region
      %s49 = ssub.s32 256, 256
      %50 = vsyncadd [#allocation7], %s49
      %s51 = sshll.u32 [#allocation9], 4
      %s52 = int_to_ptr.vmem [resolvable:$true] %s51
      %57 = dma.hbm_to_vmem [thread:$0]  %s3, 256, %s52, [#allocation7], 128, 128, 8
    $region17: #{tpu_custom_call.1} parent=1 // pred_fallthru
      _
    // Predicated region
    $region18: #{tpu_custom_call.1} parent=1 // pred_check
      _
    $region19: #{tpu_custom_call.1} parent=1 // pred_check_branch
      %59 = sbr.rel (0) target = $region21
    $region20: #{tpu_custom_call.1} parent=1 // pred_region
      _
    $region21: #{tpu_custom_call.1} parent=1 // pred_fallthru
      _
    // Predicated region
    $region22: #{tpu_custom_call.1} parent=1 // pred_check
      _
    $region23: #{tpu_custom_call.1} parent=1 // pred_check_branch
      %61 = sbr.rel (0) target = $region25
    $region24: #{tpu_custom_call.1} parent=1 // pred_region
      %62 = dma.done [#allocation3], 3072
    $region25: #{tpu_custom_call.1} parent=1 // pred_fallthru
      _
    // Predicated region
    $region26: #{tpu_custom_call.1} parent=1 // pred_check
      _
    $region27: #{tpu_custom_call.1} parent=1 // pred_check_branch
      %64 = sbr.rel (0) target = $region29
    $region28: #{tpu_custom_call.1} parent=1 // pred_region
      %65 = dma.done [#allocation7], 128
    $region29: #{tpu_custom_call.1} parent=1 // pred_fallthru
      _
    // Predicated region
    $region30: #{tpu_custom_call.1} parent=1 // pred_check
      _
    $region31: #{tpu_custom_call.1} parent=1 // pred_check_branch
      %67 = sbr.rel (0) target = $region33
    $region32: #{tpu_custom_call.1} parent=1 // pred_region
      %68 = dma.done [#allocation5], 16
    $region33: #{tpu_custom_call.1} parent=1 // pred_fallthru
      _
    // Predicated region
    $region34: #{tpu_custom_call.1} parent=1 // pred_check
      _
    $region35: #{tpu_custom_call.1} parent=1 // pred_check_branch
      %70 = sbr.rel (0) target = $region37
    $region36: #{tpu_custom_call.1} parent=1 // pred_region
      %71 = dma.done [#allocation7], 256
    $region37: #{tpu_custom_call.1} parent=1 // pred_fallthru
      _
    %72 = sfence
    %v73 = vld [vmem:[#allocation6] sm:$0xff]
    %vm74 = vcmp.gt.f32.partialorder %v73, 0.5
    %v75 = vsel %vm74, 1, 0
    %v76 = vlaneseq
    %v77 = vshrl.u32 %v76, 7
    %v78 = vsub.s32 0, %v77
    %v79 = vrot.slane %v75, %v78
    %v80 = vlaneseq
    %v81 = vshrl.u32 %v80, 7
    %v82 = vsub.s32 1, %v81
    %v83 = vrot.slane %v75, %v82
    %v84 = vlaneseq
    %v85 = vshrl.u32 %v84, 7
    %v86 = vsub.s32 2, %v85
    %v87 = vrot.slane %v75, %v86
    %v88 = vlaneseq
    %v89 = vshrl.u32 %v88, 7
    %v90 = vsub.s32 3, %v89
    %v91 = vrot.slane %v75, %v90
    %v92 = vlaneseq
    %v93 = vshrl.u32 %v92, 7
    %v94 = vsub.s32 4, %v93
    %v95 = vrot.slane %v75, %v94
    %v96 = vlaneseq
    %v97 = vshrl.u32 %v96, 7
    %v98 = vsub.s32 5, %v97
    %v99 = vrot.slane %v75, %v98
    %v100 = vlaneseq
    %v101 = vshrl.u32 %v100, 7
    %v102 = vsub.s32 6, %v101
    %v103 = vrot.slane %v75, %v102
    %v104 = vlaneseq
    %v105 = vshrl.u32 %v104, 7
    %v106 = vsub.s32 7, %v105
    %v107 = vrot.slane %v75, %v106
    %vm108 = vcmp.eq.s32.totalorder %v79, 1
    %vm109 = vcmp.eq.s32.totalorder %v83, 1
    %vm110 = vcmp.eq.s32.totalorder %v87, 1
    %vm111 = vcmp.eq.s32.totalorder %v91, 1
    %vm112 = vcmp.eq.s32.totalorder %v95, 1
    %vm113 = vcmp.eq.s32.totalorder %v99, 1
    %vm114 = vcmp.eq.s32.totalorder %v103, 1
    %vm115 = vcmp.eq.s32.totalorder %v107, 1
    %v116 = vld [vmem:[#allocation9] sm:$0xff]
    %v117 = vld [vmem:[#allocation9 + $0x8] sm:$0x3]
    %v118 = vld [vmem:[%s4] sm:$0x1]
    %v120 = vlaneseq
    %v121 = vshrl.u32 %v120, 7
    %v122 = vsub.s32 0, %v121
    %v123 = vrot.slane %v118, %v122
    %s125 = smul.u32 0, 8
    %s126 = smul.addr %s125, 8
    %s127 = scalar_lea.vmem [#allocation2], %s126
    %v128 = vld [vmem:[%s127] sm:$0xff]
    %v129 = vld [vmem:[%s127 + $0x8] sm:$0xff]
    %v130 = vld [vmem:[%s127 + $0x10] sm:$0xff]
    %v131 = vld [vmem:[%s127 + $0x18] sm:$0xff]
    %v132 = vld [vmem:[%s127 + $0x20] sm:$0xff]
    %v133 = vld [vmem:[%s127 + $0x28] sm:$0xff]
    %v134 = vld [vmem:[%s127 + $0x30] sm:$0xff]
    %v135 = vld [vmem:[%s127 + $0x38] sm:$0xff]
    %s136 = sadd.s32 %s125, 8
    %s137 = smul.addr %s136, 8
    %s138 = scalar_lea.vmem [#allocation2], %s137
    %v139 = vld [vmem:[%s138] sm:$0xff]
    %v140 = vld [vmem:[%s138 + $0x8] sm:$0xff]
    %v141 = vld [vmem:[%s138 + $0x10] sm:$0xff]
    %v142 = vld [vmem:[%s138 + $0x18] sm:$0xff]
    %v143 = vld [vmem:[%s138 + $0x20] sm:$0xff]
    %v144 = vld [vmem:[%s138 + $0x28] sm:$0xff]
    %v145 = vld [vmem:[%s138 + $0x30] sm:$0xff]
    %v146 = vld [vmem:[%s138 + $0x38] sm:$0xff]
    %v147 = vadd.f32 %v128, %v139
    %v148 = vadd.f32 %v129, %v140
    %v149 = vadd.f32 %v130, %v141
    %v150 = vadd.f32 %v131, %v142
    %v151 = vadd.f32 %v132, %v143
    %v152 = vadd.f32 %v133, %v144
    %v153 = vadd.f32 %v134, %v145
    %v154 = vadd.f32 %v135, %v146
    %s155 = sadd.s32 %s125, 16
    %s156 = smul.addr %s155, 8
    %s157 = scalar_lea.vmem [#allocation2], %s156
    %v158 = vld [vmem:[%s157] sm:$0xff]
    %v159 = vld [vmem:[%s157 + $0x8] sm:$0xff]
    %v160 = vld [vmem:[%s157 + $0x10] sm:$0xff]
    %v161 = vld [vmem:[%s157 + $0x18] sm:$0xff]
    %v162 = vld [vmem:[%s157 + $0x20] sm:$0xff]
    %v163 = vld [vmem:[%s157 + $0x28] sm:$0xff]
    %v164 = vld [vmem:[%s157 + $0x30] sm:$0xff]
    %v165 = vld [vmem:[%s157 + $0x38] sm:$0xff]
    %v166 = vadd.f32 %v147, %v158
    %v167 = vadd.f32 %v148, %v159
    %v168 = vadd.f32 %v149, %v160
    %v169 = vadd.f32 %v150, %v161
    %v170 = vadd.f32 %v151, %v162
    %v171 = vadd.f32 %v152, %v163
    %v172 = vadd.f32 %v153, %v164
    %v173 = vadd.f32 %v154, %v165
    %s174 = sld [smem:[#allocation8]]
    %v175 = vstv %s174
    %v176 = vmul.f32 %v166, %v175
    %v177 = vmul.f32 %v167, %v175
    %v178 = vmul.f32 %v168, %v175
    %v179 = vmul.f32 %v169, %v175
    %v180 = vmul.f32 %v170, %v175
    %v181 = vmul.f32 %v171, %v175
    %v182 = vmul.f32 %v172, %v175
    %v183 = vmul.f32 %v173, %v175
    %s184 = sld [smem:[#allocation8 + $0x1]]
    %v185 = vstv %s184
    %v186 = vmul.f32 %v166, %v185
    %v187 = vmul.f32 %v167, %v185
    %v188 = vmul.f32 %v168, %v185
    %v189 = vmul.f32 %v169, %v185
    %v190 = vmul.f32 %v170, %v185
    %v191 = vmul.f32 %v171, %v185
    %v192 = vmul.f32 %v172, %v185
    %v193 = vmul.f32 %v173, %v185
    %202 = vrot.lane.b32.xlu0 %v186, 127
    %v203 = vpop.permute.xlu0 %202
    %204 = vrot.lane.b32.xlu0 %v187, 127
    %v205 = vpop.permute.xlu0 %204
    %206 = vrot.lane.b32.xlu0 %v188, 127
    %v207 = vpop.permute.xlu0 %206
    %208 = vrot.lane.b32.xlu0 %v189, 127
    %v209 = vpop.permute.xlu0 %208
    %210 = vrot.lane.b32.xlu0 %v190, 127
    %v211 = vpop.permute.xlu0 %210
    %212 = vrot.lane.b32.xlu0 %v191, 127
    %v213 = vpop.permute.xlu0 %212
    %214 = vrot.lane.b32.xlu0 %v192, 127
    %v215 = vpop.permute.xlu0 %214
    %216 = vrot.lane.b32.xlu0 %v193, 127
    %v217 = vpop.permute.xlu0 %216
    %vm218 = vcmask 1039360
    %v219 = vsel %vm218, %v203, %v205
    %v220 = vsel %vm218, %v205, %v207
    %v221 = vsel %vm218, %v207, %v209
    %v222 = vsel %vm218, %v209, %v211
    %v223 = vsel %vm218, %v211, %v213
    %v224 = vsel %vm218, %v213, %v215
    %v225 = vsel %vm218, %v215, %v217
    %v234 = vadd.f32 %v176, %v219
    %v235 = vadd.f32 %v177, %v220
    %v236 = vadd.f32 %v178, %v221
    %v237 = vadd.f32 %v179, %v222
    %v238 = vadd.f32 %v180, %v223
    %v239 = vadd.f32 %v181, %v224
    %v240 = vadd.f32 %v182, %v225
    %v241 = vadd.f32 %v183, %v217
    %s242 = sld [smem:[#allocation8 + $0x2]]
    %v243 = vstv %s242
    %v244 = vmul.f32 %v166, %v243
    %v245 = vmul.f32 %v167, %v243
    %v246 = vmul.f32 %v168, %v243
    %v247 = vmul.f32 %v169, %v243
    %v248 = vmul.f32 %v170, %v243
    %v249 = vmul.f32 %v171, %v243
    %v250 = vmul.f32 %v172, %v243
    %v251 = vmul.f32 %v173, %v243
    %260 = vrot.lane.b32.xlu0 %v244, 97
    %v261 = vpop.permute.xlu0 %260
    %262 = vrot.lane.b32.xlu0 %v245, 97
    %v263 = vpop.permute.xlu0 %262
    %264 = vrot.lane.b32.xlu0 %v246, 97
    %v265 = vpop.permute.xlu0 %264
    %266 = vrot.lane.b32.xlu0 %v247, 97
    %v267 = vpop.permute.xlu0 %266
    %268 = vrot.lane.b32.xlu0 %v248, 97
    %v269 = vpop.permute.xlu0 %268
    %270 = vrot.lane.b32.xlu0 %v249, 97
    %v271 = vpop.permute.xlu0 %270
    %272 = vrot.lane.b32.xlu0 %v250, 97
    %v273 = vpop.permute.xlu0 %272
    %274 = vrot.lane.b32.xlu0 %v251, 97
    %v275 = vpop.permute.xlu0 %274
    %vm276 = vcmask 793600
    %v277 = vsel %vm276, %v261, %v263
    %v278 = vsel %vm276, %v263, %v265
    %v279 = vsel %vm276, %v265, %v267
    %v280 = vsel %vm276, %v267, %v269
    %v281 = vsel %vm276, %v269, %v271
    %v282 = vsel %vm276, %v271, %v273
    %v283 = vsel %vm276, %v273, %v275
    %v292 = vadd.f32 %v234, %v277
    %v293 = vadd.f32 %v235, %v278
    %v294 = vadd.f32 %v236, %v279
    %v295 = vadd.f32 %v237, %v280
    %v296 = vadd.f32 %v238, %v281
    %v297 = vadd.f32 %v239, %v282
    %v298 = vadd.f32 %v240, %v283
    %v299 = vadd.f32 %v241, %v275
    %s300 = sld [smem:[#allocation8 + $0x3]]
    %v301 = vstv %s300
    %v302 = vmul.f32 %v166, %v301
    %v303 = vmul.f32 %v167, %v301
    %v304 = vmul.f32 %v168, %v301
    %v305 = vmul.f32 %v169, %v301
    %v306 = vmul.f32 %v170, %v301
    %v307 = vmul.f32 %v171, %v301
    %v308 = vmul.f32 %v172, %v301
    %v309 = vmul.f32 %v173, %v301
    %318 = vrot.lane.b32.xlu0 %v302, 96
    %v319 = vpop.permute.xlu0 %318
    %320 = vrot.lane.b32.xlu0 %v303, 96
    %v321 = vpop.permute.xlu0 %320
    %322 = vrot.lane.b32.xlu0 %v304, 96
    %v323 = vpop.permute.xlu0 %322
    %324 = vrot.lane.b32.xlu0 %v305, 96
    %v325 = vpop.permute.xlu0 %324
    %326 = vrot.lane.b32.xlu0 %v306, 96
    %v327 = vpop.permute.xlu0 %326
    %328 = vrot.lane.b32.xlu0 %v307, 96
    %v329 = vpop.permute.xlu0 %328
    %330 = vrot.lane.b32.xlu0 %v308, 96
    %v331 = vpop.permute.xlu0 %330
    %332 = vrot.lane.b32.xlu0 %v309, 96
    %v333 = vpop.permute.xlu0 %332
    %vm334 = vcmask 785408
    %v335 = vsel %vm334, %v319, %v321
    %v336 = vsel %vm334, %v321, %v323
    %v337 = vsel %vm334, %v323, %v325
    %v338 = vsel %vm334, %v325, %v327
    %v339 = vsel %vm334, %v327, %v329
    %v340 = vsel %vm334, %v329, %v331
    %v341 = vsel %vm334, %v331, %v333
    %v350 = vadd.f32 %v292, %v335
    %v351 = vadd.f32 %v293, %v336
    %v352 = vadd.f32 %v294, %v337
    %v353 = vadd.f32 %v295, %v338
    %v354 = vadd.f32 %v296, %v339
    %v355 = vadd.f32 %v297, %v340
    %v356 = vadd.f32 %v298, %v341
    %v357 = vadd.f32 %v299, %v333
    %v358 = vsel %vm108, %v350, -inf
    %v359 = vsel %vm109, %v351, -inf
    %v360 = vsel %vm110, %v352, -inf
    %v361 = vsel %vm111, %v353, -inf
    %v362 = vsel %vm112, %v354, -inf
    %v363 = vsel %vm113, %v355, -inf
    %v364 = vsel %vm114, %v356, -inf
    %v365 = vsel %vm115, %v357, -inf
    %v366 = vmax.f32 %v358, %v362
    %v367 = vmax.f32 %v359, %v363
    %v368 = vmax.f32 %v360, %v364
    %vm369 = vcmask 269312
    %v370 = vsel %vm369, %v365, -inf
    %v371 = vmax.f32 %v361, %v370
    %v372 = vmax.f32 %v366, %v367
    %v373 = vmax.f32 %v368, %v371
    %v374 = vmax.f32 %v372, %v373
    %375 = vmax.xlane.f32.xlu0 %v374
    %v376 = vpop.xlane.xlu0 %375
    %v377 = vmax.f32 %v376, 0.0
    %v378 = vlaneseq
    %v379 = vshrl.u32 %v378, 7
    %v380 = vsub.s32 0, %v379
    %v381 = vrot.slane %v116, %v380
    %v382 = vmul.f32 %v377, %v381
    %v383 = vadd.f32 %v123, %v382
    %s384 = sld [smem:[#allocation8 + $0x4]]
    %v385 = vstv %s384
    %v386 = vmul.f32 %v166, %v385
    %v387 = vmul.f32 %v167, %v385
    %v388 = vmul.f32 %v168, %v385
    %v389 = vmul.f32 %v169, %v385
    %v390 = vmul.f32 %v170, %v385
    %v391 = vmul.f32 %v171, %v385
    %v392 = vmul.f32 %v172, %v385
    %v393 = vmul.f32 %v173, %v385
    %s394 = sld [smem:[#allocation8 + $0x5]]
    %v395 = vstv %s394
    %v396 = vmul.f32 %v166, %v395
    %v397 = vmul.f32 %v167, %v395
    %v398 = vmul.f32 %v168, %v395
    %v399 = vmul.f32 %v169, %v395
    %v400 = vmul.f32 %v170, %v395
    %v401 = vmul.f32 %v171, %v395
    %v402 = vmul.f32 %v172, %v395
    %v403 = vmul.f32 %v173, %v395
    %412 = vrot.lane.b32.xlu0 %v396, 127
    %v413 = vpop.permute.xlu0 %412
    %414 = vrot.lane.b32.xlu0 %v397, 127
    %v415 = vpop.permute.xlu0 %414
    %416 = vrot.lane.b32.xlu0 %v398, 127
    %v417 = vpop.permute.xlu0 %416
    %418 = vrot.lane.b32.xlu0 %v399, 127
    %v419 = vpop.permute.xlu0 %418
    %420 = vrot.lane.b32.xlu0 %v400, 127
    %v421 = vpop.permute.xlu0 %420
    %422 = vrot.lane.b32.xlu0 %v401, 127
    %v423 = vpop.permute.xlu0 %422
    %424 = vrot.lane.b32.xlu0 %v402, 127
    %v425 = vpop.permute.xlu0 %424
    %426 = vrot.lane.b32.xlu0 %v403, 127
    %v427 = vpop.permute.xlu0 %426
    %v428 = vsel %vm218, %v413, %v415
    %v429 = vsel %vm218, %v415, %v417
    %v430 = vsel %vm218, %v417, %v419
    %v431 = vsel %vm218, %v419, %v421
    %v432 = vsel %vm218, %v421, %v423
    %v433 = vsel %vm218, %v423, %v425
    %v434 = vsel %vm218, %v425, %v427
    %v443 = vadd.f32 %v386, %v428
    %v444 = vadd.f32 %v387, %v429
    %v445 = vadd.f32 %v388, %v430
    %v446 = vadd.f32 %v389, %v431
    %v447 = vadd.f32 %v390, %v432
    %v448 = vadd.f32 %v391, %v433
    %v449 = vadd.f32 %v392, %v434
    %v450 = vadd.f32 %v393, %v427
    %s451 = sld [smem:[#allocation8 + $0x6]]
    %v452 = vstv %s451
    %v453 = vmul.f32 %v166, %v452
    %v454 = vmul.f32 %v167, %v452
    %v455 = vmul.f32 %v168, %v452
    %v456 = vmul.f32 %v169, %v452
    %v457 = vmul.f32 %v170, %v452
    %v458 = vmul.f32 %v171, %v452
    %v459 = vmul.f32 %v172, %v452
    %v460 = vmul.f32 %v173, %v452
    %469 = vrot.lane.b32.xlu0 %v453, 97
    %v470 = vpop.permute.xlu0 %469
    %471 = vrot.lane.b32.xlu0 %v454, 97
    %v472 = vpop.permute.xlu0 %471
    %473 = vrot.lane.b32.xlu0 %v455, 97
    %v474 = vpop.permute.xlu0 %473
    %475 = vrot.lane.b32.xlu0 %v456, 97
    %v476 = vpop.permute.xlu0 %475
    %477 = vrot.lane.b32.xlu0 %v457, 97
    %v478 = vpop.permute.xlu0 %477
    %479 = vrot.lane.b32.xlu0 %v458, 97
    %v480 = vpop.permute.xlu0 %479
    %481 = vrot.lane.b32.xlu0 %v459, 97
    %v482 = vpop.permute.xlu0 %481
    %483 = vrot.lane.b32.xlu0 %v460, 97
    %v484 = vpop.permute.xlu0 %483
    %v485 = vsel %vm276, %v470, %v472
    %v486 = vsel %vm276, %v472, %v474
    %v487 = vsel %vm276, %v474, %v476
    %v488 = vsel %vm276, %v476, %v478
    %v489 = vsel %vm276, %v478, %v480
    %v490 = vsel %vm276, %v480, %v482
    %v491 = vsel %vm276, %v482, %v484
    %v500 = vadd.f32 %v443, %v485
    %v501 = vadd.f32 %v444, %v486
    %v502 = vadd.f32 %v445, %v487
    %v503 = vadd.f32 %v446, %v488
    %v504 = vadd.f32 %v447, %v489
    %v505 = vadd.f32 %v448, %v490
    %v506 = vadd.f32 %v449, %v491
    %v507 = vadd.f32 %v450, %v484
    %s508 = sld [smem:[#allocation8 + $0x7]]
    %v509 = vstv %s508
    %v510 = vmul.f32 %v166, %v509
    %v511 = vmul.f32 %v167, %v509
    %v512 = vmul.f32 %v168, %v509
    %v513 = vmul.f32 %v169, %v509
    %v514 = vmul.f32 %v170, %v509
    %v515 = vmul.f32 %v171, %v509
    %v516 = vmul.f32 %v172, %v509
    %v517 = vmul.f32 %v173, %v509
    %526 = vrot.lane.b32.xlu0 %v510, 96
    %v527 = vpop.permute.xlu0 %526
    %528 = vrot.lane.b32.xlu0 %v511, 96
    %v529 = vpop.permute.xlu0 %528
    %530 = vrot.lane.b32.xlu0 %v512, 96
    %v531 = vpop.permute.xlu0 %530
    %532 = vrot.lane.b32.xlu0 %v513, 96
    %v533 = vpop.permute.xlu0 %532
    %534 = vrot.lane.b32.xlu0 %v514, 96
    %v535 = vpop.permute.xlu0 %534
    %536 = vrot.lane.b32.xlu0 %v515, 96
    %v537 = vpop.permute.xlu0 %536
    %538 = vrot.lane.b32.xlu0 %v516, 96
    %v539 = vpop.permute.xlu0 %538
    %540 = vrot.lane.b32.xlu0 %v517, 96
    %v541 = vpop.permute.xlu0 %540
    %v542 = vsel %vm334, %v527, %v529
    %v543 = vsel %vm334, %v529, %v531
    %v544 = vsel %vm334, %v531, %v533
    %v545 = vsel %vm334, %v533, %v535
    %v546 = vsel %vm334, %v535, %v537
    %v547 = vsel %vm334, %v537, %v539
    %v548 = vsel %vm334, %v539, %v541
    %v557 = vadd.f32 %v500, %v542
    %v558 = vadd.f32 %v501, %v543
    %v559 = vadd.f32 %v502, %v544
    %v560 = vadd.f32 %v503, %v545
    %v561 = vadd.f32 %v504, %v546
    %v562 = vadd.f32 %v505, %v547
    %v563 = vadd.f32 %v506, %v548
    %v564 = vadd.f32 %v507, %v541
    %v565 = vsel %vm108, %v557, -inf
    %v566 = vsel %vm109, %v558, -inf
    %v567 = vsel %vm110, %v559, -inf
    %v568 = vsel %vm111, %v560, -inf
    %v569 = vsel %vm112, %v561, -inf
    %v570 = vsel %vm113, %v562, -inf
    %v571 = vsel %vm114, %v563, -inf
    %v572 = vsel %vm115, %v564, -inf
    %v573 = vmax.f32 %v565, %v569
    %v574 = vmax.f32 %v566, %v570
    %v575 = vmax.f32 %v567, %v571
    %v576 = vsel %vm369, %v572, -inf
    %v577 = vmax.f32 %v568, %v576
    %v578 = vmax.f32 %v573, %v574
    %v579 = vmax.f32 %v575, %v577
    %v580 = vmax.f32 %v578, %v579
    %581 = vmax.xlane.f32.xlu0 %v580
    %v582 = vpop.xlane.xlu0 %581
    %v583 = vmax.f32 %v582, 0.0
    %v584 = vlaneseq
    %v585 = vshrl.u32 %v584, 7
    %v586 = vsub.s32 1, %v585
    %v587 = vrot.slane %v116, %v586
    %v588 = vmul.f32 %v583, %v587
    %v589 = vadd.f32 %v383, %v588
    %s590 = sld [smem:[#allocation8 + $0x8]]
    %v591 = vstv %s590
    %v592 = vmul.f32 %v166, %v591
    %v593 = vmul.f32 %v167, %v591
    %v594 = vmul.f32 %v168, %v591
    %v595 = vmul.f32 %v169, %v591
    %v596 = vmul.f32 %v170, %v591
    %v597 = vmul.f32 %v171, %v591
    %v598 = vmul.f32 %v172, %v591
    %v599 = vmul.f32 %v173, %v591
    %s600 = sld [smem:[#allocation8 + $0x9]]
    %v601 = vstv %s600
    %v602 = vmul.f32 %v166, %v601
    %v603 = vmul.f32 %v167, %v601
    %v604 = vmul.f32 %v168, %v601
    %v605 = vmul.f32 %v169, %v601
    %v606 = vmul.f32 %v170, %v601
    %v607 = vmul.f32 %v171, %v601
    %v608 = vmul.f32 %v172, %v601
    %v609 = vmul.f32 %v173, %v601
    %618 = vrot.lane.b32.xlu0 %v602, 127
    %v619 = vpop.permute.xlu0 %618
    %620 = vrot.lane.b32.xlu0 %v603, 127
    %v621 = vpop.permute.xlu0 %620
    %622 = vrot.lane.b32.xlu0 %v604, 127
    %v623 = vpop.permute.xlu0 %622
    %624 = vrot.lane.b32.xlu0 %v605, 127
    %v625 = vpop.permute.xlu0 %624
    %626 = vrot.lane.b32.xlu0 %v606, 127
    %v627 = vpop.permute.xlu0 %626
    %628 = vrot.lane.b32.xlu0 %v607, 127
    %v629 = vpop.permute.xlu0 %628
    %630 = vrot.lane.b32.xlu0 %v608, 127
    %v631 = vpop.permute.xlu0 %630
    %632 = vrot.lane.b32.xlu0 %v609, 127
    %v633 = vpop.permute.xlu0 %632
    %v634 = vsel %vm218, %v619, %v621
    %v635 = vsel %vm218, %v621, %v623
    %v636 = vsel %vm218, %v623, %v625
    %v637 = vsel %vm218, %v625, %v627
    %v638 = vsel %vm218, %v627, %v629
    %v639 = vsel %vm218, %v629, %v631
    %v640 = vsel %vm218, %v631, %v633
    %v649 = vadd.f32 %v592, %v634
    %v650 = vadd.f32 %v593, %v635
    %v651 = vadd.f32 %v594, %v636
    %v652 = vadd.f32 %v595, %v637
    %v653 = vadd.f32 %v596, %v638
    %v654 = vadd.f32 %v597, %v639
    %v655 = vadd.f32 %v598, %v640
    %v656 = vadd.f32 %v599, %v633
    %s657 = sld [smem:[#allocation8 + $0xa]]
    %v658 = vstv %s657
    %v659 = vmul.f32 %v166, %v658
    %v660 = vmul.f32 %v167, %v658
    %v661 = vmul.f32 %v168, %v658
    %v662 = vmul.f32 %v169, %v658
    %v663 = vmul.f32 %v170, %v658
    %v664 = vmul.f32 %v171, %v658
    %v665 = vmul.f32 %v172, %v658
    %v666 = vmul.f32 %v173, %v658
    %675 = vrot.lane.b32.xlu0 %v659, 97
    %v676 = vpop.permute.xlu0 %675
    %677 = vrot.lane.b32.xlu0 %v660, 97
    %v678 = vpop.permute.xlu0 %677
    %679 = vrot.lane.b32.xlu0 %v661, 97
    %v680 = vpop.permute.xlu0 %679
    %681 = vrot.lane.b32.xlu0 %v662, 97
    %v682 = vpop.permute.xlu0 %681
    %683 = vrot.lane.b32.xlu0 %v663, 97
    %v684 = vpop.permute.xlu0 %683
    %685 = vrot.lane.b32.xlu0 %v664, 97
    %v686 = vpop.permute.xlu0 %685
    %687 = vrot.lane.b32.xlu0 %v665, 97
    %v688 = vpop.permute.xlu0 %687
    %689 = vrot.lane.b32.xlu0 %v666, 97
    %v690 = vpop.permute.xlu0 %689
    %v691 = vsel %vm276, %v676, %v678
    %v692 = vsel %vm276, %v678, %v680
    %v693 = vsel %vm276, %v680, %v682
    %v694 = vsel %vm276, %v682, %v684
    %v695 = vsel %vm276, %v684, %v686
    %v696 = vsel %vm276, %v686, %v688
    %v697 = vsel %vm276, %v688, %v690
    %v706 = vadd.f32 %v649, %v691
    %v707 = vadd.f32 %v650, %v692
    %v708 = vadd.f32 %v651, %v693
    %v709 = vadd.f32 %v652, %v694
    %v710 = vadd.f32 %v653, %v695
    %v711 = vadd.f32 %v654, %v696
    %v712 = vadd.f32 %v655, %v697
    %v713 = vadd.f32 %v656, %v690
    %s714 = sld [smem:[#allocation8 + $0xb]]
    %v715 = vstv %s714
    %v716 = vmul.f32 %v166, %v715
    %v717 = vmul.f32 %v167, %v715
    %v718 = vmul.f32 %v168, %v715
    %v719 = vmul.f32 %v169, %v715
    %v720 = vmul.f32 %v170, %v715
    %v721 = vmul.f32 %v171, %v715
    %v722 = vmul.f32 %v172, %v715
    %v723 = vmul.f32 %v173, %v715
    %732 = vrot.lane.b32.xlu0 %v716, 96
    %v733 = vpop.permute.xlu0 %732
    %734 = vrot.lane.b32.xlu0 %v717, 96
    %v735 = vpop.permute.xlu0 %734
    %736 = vrot.lane.b32.xlu0 %v718, 96
    %v737 = vpop.permute.xlu0 %736
    %738 = vrot.lane.b32.xlu0 %v719, 96
    %v739 = vpop.permute.xlu0 %738
    %740 = vrot.lane.b32.xlu0 %v720, 96
    %v741 = vpop.permute.xlu0 %740
    %742 = vrot.lane.b32.xlu0 %v721, 96
    %v743 = vpop.permute.xlu0 %742
    %744 = vrot.lane.b32.xlu0 %v722, 96
    %v745 = vpop.permute.xlu0 %744
    %746 = vrot.lane.b32.xlu0 %v723, 96
    %v747 = vpop.permute.xlu0 %746
    %v748 = vsel %vm334, %v733, %v735
    %v749 = vsel %vm334, %v735, %v737
    %v750 = vsel %vm334, %v737, %v739
    %v751 = vsel %vm334, %v739, %v741
    %v752 = vsel %vm334, %v741, %v743
    %v753 = vsel %vm334, %v743, %v745
    %v754 = vsel %vm334, %v745, %v747
    %v763 = vadd.f32 %v706, %v748
    %v764 = vadd.f32 %v707, %v749
    %v765 = vadd.f32 %v708, %v750
    %v766 = vadd.f32 %v709, %v751
    %v767 = vadd.f32 %v710, %v752
    %v768 = vadd.f32 %v711, %v753
    %v769 = vadd.f32 %v712, %v754
    %v770 = vadd.f32 %v713, %v747
    %v771 = vsel %vm108, %v763, -inf
    %v772 = vsel %vm109, %v764, -inf
    %v773 = vsel %vm110, %v765, -inf
    %v774 = vsel %vm111, %v766, -inf
    %v775 = vsel %vm112, %v767, -inf
    %v776 = vsel %vm113, %v768, -inf
    %v777 = vsel %vm114, %v769, -inf
    %v778 = vsel %vm115, %v770, -inf
    %v779 = vmax.f32 %v771, %v775
    %v780 = vmax.f32 %v772, %v776
    %v781 = vmax.f32 %v773, %v777
    %v782 = vsel %vm369, %v778, -inf
    %v783 = vmax.f32 %v774, %v782
    %v784 = vmax.f32 %v779, %v780
    %v785 = vmax.f32 %v781, %v783
    %v786 = vmax.f32 %v784, %v785
    %787 = vmax.xlane.f32.xlu0 %v786
    %v788 = vpop.xlane.xlu0 %787
    %v789 = vmax.f32 %v788, 0.0
    %v790 = vlaneseq
    %v791 = vshrl.u32 %v790, 7
    %v792 = vsub.s32 2, %v791
    %v793 = vrot.slane %v116, %v792
    %v794 = vmul.f32 %v789, %v793
    %v795 = vadd.f32 %v589, %v794
    %s796 = sld [smem:[#allocation8 + $0xc]]
    %v797 = vstv %s796
    %v798 = vmul.f32 %v166, %v797
    %v799 = vmul.f32 %v167, %v797
    %v800 = vmul.f32 %v168, %v797
    %v801 = vmul.f32 %v169, %v797
    %v802 = vmul.f32 %v170, %v797
    %v803 = vmul.f32 %v171, %v797
    %v804 = vmul.f32 %v172, %v797
    %v805 = vmul.f32 %v173, %v797
    %s806 = sld [smem:[#allocation8 + $0xd]]
    %v807 = vstv %s806
    %v808 = vmul.f32 %v166, %v807
    %v809 = vmul.f32 %v167, %v807
    %v810 = vmul.f32 %v168, %v807
    %v811 = vmul.f32 %v169, %v807
    %v812 = vmul.f32 %v170, %v807
    %v813 = vmul.f32 %v171, %v807
    %v814 = vmul.f32 %v172, %v807
    %v815 = vmul.f32 %v173, %v807
    %824 = vrot.lane.b32.xlu0 %v808, 127
    %v825 = vpop.permute.xlu0 %824
    %826 = vrot.lane.b32.xlu0 %v809, 127
    %v827 = vpop.permute.xlu0 %826
    %828 = vrot.lane.b32.xlu0 %v810, 127
    %v829 = vpop.permute.xlu0 %828
    %830 = vrot.lane.b32.xlu0 %v811, 127
    %v831 = vpop.permute.xlu0 %830
    %832 = vrot.lane.b32.xlu0 %v812, 127
    %v833 = vpop.permute.xlu0 %832
    %834 = vrot.lane.b32.xlu0 %v813, 127
    %v835 = vpop.permute.xlu0 %834
    %836 = vrot.lane.b32.xlu0 %v814, 127
    %v837 = vpop.permute.xlu0 %836
    %838 = vrot.lane.b32.xlu0 %v815, 127
    %v839 = vpop.permute.xlu0 %838
    %v840 = vsel %vm218, %v825, %v827
    %v841 = vsel %vm218, %v827, %v829
    %v842 = vsel %vm218, %v829, %v831
    %v843 = vsel %vm218, %v831, %v833
    %v844 = vsel %vm218, %v833, %v835
    %v845 = vsel %vm218, %v835, %v837
    %v846 = vsel %vm218, %v837, %v839
    %v855 = vadd.f32 %v798, %v840
    %v856 = vadd.f32 %v799, %v841
    %v857 = vadd.f32 %v800, %v842
    %v858 = vadd.f32 %v801, %v843
    %v859 = vadd.f32 %v802, %v844
    %v860 = vadd.f32 %v803, %v845
    %v861 = vadd.f32 %v804, %v846
    %v862 = vadd.f32 %v805, %v839
    %s863 = sld [smem:[#allocation8 + $0xe]]
    %v864 = vstv %s863
    %v865 = vmul.f32 %v166, %v864
    %v866 = vmul.f32 %v167, %v864
    %v867 = vmul.f32 %v168, %v864
    %v868 = vmul.f32 %v169, %v864
    %v869 = vmul.f32 %v170, %v864
    %v870 = vmul.f32 %v171, %v864
    %v871 = vmul.f32 %v172, %v864
    %v872 = vmul.f32 %v173, %v864
    %881 = vrot.lane.b32.xlu0 %v865, 97
    %v882 = vpop.permute.xlu0 %881
    %883 = vrot.lane.b32.xlu0 %v866, 97
    %v884 = vpop.permute.xlu0 %883
    %885 = vrot.lane.b32.xlu0 %v867, 97
    %v886 = vpop.permute.xlu0 %885
    %887 = vrot.lane.b32.xlu0 %v868, 97
    %v888 = vpop.permute.xlu0 %887
    %889 = vrot.lane.b32.xlu0 %v869, 97
    %v890 = vpop.permute.xlu0 %889
    %891 = vrot.lane.b32.xlu0 %v870, 97
    %v892 = vpop.permute.xlu0 %891
    %893 = vrot.lane.b32.xlu0 %v871, 97
    %v894 = vpop.permute.xlu0 %893
    %895 = vrot.lane.b32.xlu0 %v872, 97
    %v896 = vpop.permute.xlu0 %895
    %v897 = vsel %vm276, %v882, %v884
    %v898 = vsel %vm276, %v884, %v886
    %v899 = vsel %vm276, %v886, %v888
    %v900 = vsel %vm276, %v888, %v890
    %v901 = vsel %vm276, %v890, %v892
    %v902 = vsel %vm276, %v892, %v894
    %v903 = vsel %vm276, %v894, %v896
    %v912 = vadd.f32 %v855, %v897
    %v913 = vadd.f32 %v856, %v898
    %v914 = vadd.f32 %v857, %v899
    %v915 = vadd.f32 %v858, %v900
    %v916 = vadd.f32 %v859, %v901
    %v917 = vadd.f32 %v860, %v902
    %v918 = vadd.f32 %v861, %v903
    %v919 = vadd.f32 %v862, %v896
    %s920 = sld [smem:[#allocation8 + $0xf]]
    %v921 = vstv %s920
    %v922 = vmul.f32 %v166, %v921
    %v923 = vmul.f32 %v167, %v921
    %v924 = vmul.f32 %v168, %v921
    %v925 = vmul.f32 %v169, %v921
    %v926 = vmul.f32 %v170, %v921
    %v927 = vmul.f32 %v171, %v921
    %v928 = vmul.f32 %v172, %v921
    %v929 = vmul.f32 %v173, %v921
    %938 = vrot.lane.b32.xlu0 %v922, 96
    %v939 = vpop.permute.xlu0 %938
    %940 = vrot.lane.b32.xlu0 %v923, 96
    %v941 = vpop.permute.xlu0 %940
    %942 = vrot.lane.b32.xlu0 %v924, 96
    %v943 = vpop.permute.xlu0 %942
    %944 = vrot.lane.b32.xlu0 %v925, 96
    %v945 = vpop.permute.xlu0 %944
    %946 = vrot.lane.b32.xlu0 %v926, 96
    %v947 = vpop.permute.xlu0 %946
    %948 = vrot.lane.b32.xlu0 %v927, 96
    %v949 = vpop.permute.xlu0 %948
    %950 = vrot.lane.b32.xlu0 %v928, 96
    %v951 = vpop.permute.xlu0 %950
    %952 = vrot.lane.b32.xlu0 %v929, 96
    %v953 = vpop.permute.xlu0 %952
    %v954 = vsel %vm334, %v939, %v941
    %v955 = vsel %vm334, %v941, %v943
    %v956 = vsel %vm334, %v943, %v945
    %v957 = vsel %vm334, %v945, %v947
    %v958 = vsel %vm334, %v947, %v949
    %v959 = vsel %vm334, %v949, %v951
    %v960 = vsel %vm334, %v951, %v953
    %v969 = vadd.f32 %v912, %v954
    %v970 = vadd.f32 %v913, %v955
    %v971 = vadd.f32 %v914, %v956
    %v972 = vadd.f32 %v915, %v957
    %v973 = vadd.f32 %v916, %v958
    %v974 = vadd.f32 %v917, %v959
    %v975 = vadd.f32 %v918, %v960
    %v976 = vadd.f32 %v919, %v953
    %v977 = vsel %vm108, %v969, -inf
    %v978 = vsel %vm109, %v970, -inf
    %v979 = vsel %vm110, %v971, -inf
    %v980 = vsel %vm111, %v972, -inf
    %v981 = vsel %vm112, %v973, -inf
    %v982 = vsel %vm113, %v974, -inf
    %v983 = vsel %vm114, %v975, -inf
    %v984 = vsel %vm115, %v976, -inf
    %v985 = vmax.f32 %v977, %v981
    %v986 = vmax.f32 %v978, %v982
    %v987 = vmax.f32 %v979, %v983
    %v988 = vsel %vm369, %v984, -inf
    %v989 = vmax.f32 %v980, %v988
    %v990 = vmax.f32 %v985, %v986
    %v991 = vmax.f32 %v987, %v989
    %v992 = vmax.f32 %v990, %v991
    %993 = vmax.xlane.f32.xlu0 %v992
    %v994 = vpop.xlane.xlu0 %993
    %v995 = vmax.f32 %v994, 0.0
    %v996 = vlaneseq
    %v997 = vshrl.u32 %v996, 7
    %v998 = vsub.s32 3, %v997
    %v999 = vrot.slane %v116, %v998
    %v1000 = vmul.f32 %v995, %v999
    %v1001 = vadd.f32 %v795, %v1000
    %s1002 = sld [smem:[#allocation8 + $0x10]]
    %v1003 = vstv %s1002
    %v1004 = vmul.f32 %v166, %v1003
    %v1005 = vmul.f32 %v167, %v1003
    %v1006 = vmul.f32 %v168, %v1003
    %v1007 = vmul.f32 %v169, %v1003
    %v1008 = vmul.f32 %v170, %v1003
    %v1009 = vmul.f32 %v171, %v1003
    %v1010 = vmul.f32 %v172, %v1003
    %v1011 = vmul.f32 %v173, %v1003
    %s1012 = sld [smem:[#allocation8 + $0x11]]
    %v1013 = vstv %s1012
    %v1014 = vmul.f32 %v166, %v1013
    %v1015 = vmul.f32 %v167, %v1013
    %v1016 = vmul.f32 %v168, %v1013
    %v1017 = vmul.f32 %v169, %v1013
    %v1018 = vmul.f32 %v170, %v1013
    %v1019 = vmul.f32 %v171, %v1013
    %v1020 = vmul.f32 %v172, %v1013
    %v1021 = vmul.f32 %v173, %v1013
    %1030 = vrot.lane.b32.xlu0 %v1014, 127
    %v1031 = vpop.permute.xlu0 %1030
    %1032 = vrot.lane.b32.xlu0 %v1015, 127
    %v1033 = vpop.permute.xlu0 %1032
    %1034 = vrot.lane.b32.xlu0 %v1016, 127
    %v1035 = vpop.permute.xlu0 %1034
    %1036 = vrot.lane.b32.xlu0 %v1017, 127
    %v1037 = vpop.permute.xlu0 %1036
    %1038 = vrot.lane.b32.xlu0 %v1018, 127
    %v1039 = vpop.permute.xlu0 %1038
    %1040 = vrot.lane.b32.xlu0 %v1019, 127
    %v1041 = vpop.permute.xlu0 %1040
    %1042 = vrot.lane.b32.xlu0 %v1020, 127
    %v1043 = vpop.permute.xlu0 %1042
    %1044 = vrot.lane.b32.xlu0 %v1021, 127
    %v1045 = vpop.permute.xlu0 %1044
    %v1046 = vsel %vm218, %v1031, %v1033
    %v1047 = vsel %vm218, %v1033, %v1035
    %v1048 = vsel %vm218, %v1035, %v1037
    %v1049 = vsel %vm218, %v1037, %v1039
    %v1050 = vsel %vm218, %v1039, %v1041
    %v1051 = vsel %vm218, %v1041, %v1043
    %v1052 = vsel %vm218, %v1043, %v1045
    %v1061 = vadd.f32 %v1004, %v1046
    %v1062 = vadd.f32 %v1005, %v1047
    %v1063 = vadd.f32 %v1006, %v1048
    %v1064 = vadd.f32 %v1007, %v1049
    %v1065 = vadd.f32 %v1008, %v1050
    %v1066 = vadd.f32 %v1009, %v1051
    %v1067 = vadd.f32 %v1010, %v1052
    %v1068 = vadd.f32 %v1011, %v1045
    %s1069 = sld [smem:[#allocation8 + $0x12]]
    %v1070 = vstv %s1069
    %v1071 = vmul.f32 %v166, %v1070
    %v1072 = vmul.f32 %v167, %v1070
    %v1073 = vmul.f32 %v168, %v1070
    %v1074 = vmul.f32 %v169, %v1070
    %v1075 = vmul.f32 %v170, %v1070
    %v1076 = vmul.f32 %v171, %v1070
    %v1077 = vmul.f32 %v172, %v1070
    %v1078 = vmul.f32 %v173, %v1070
    %1087 = vrot.lane.b32.xlu0 %v1071, 97
    %v1088 = vpop.permute.xlu0 %1087
    %1089 = vrot.lane.b32.xlu0 %v1072, 97
    %v1090 = vpop.permute.xlu0 %1089
    %1091 = vrot.lane.b32.xlu0 %v1073, 97
    %v1092 = vpop.permute.xlu0 %1091
    %1093 = vrot.lane.b32.xlu0 %v1074, 97
    %v1094 = vpop.permute.xlu0 %1093
    %1095 = vrot.lane.b32.xlu0 %v1075, 97
    %v1096 = vpop.permute.xlu0 %1095
    %1097 = vrot.lane.b32.xlu0 %v1076, 97
    %v1098 = vpop.permute.xlu0 %1097
    %1099 = vrot.lane.b32.xlu0 %v1077, 97
    %v1100 = vpop.permute.xlu0 %1099
    %1101 = vrot.lane.b32.xlu0 %v1078, 97
    %v1102 = vpop.permute.xlu0 %1101
    %v1103 = vsel %vm276, %v1088, %v1090
    %v1104 = vsel %vm276, %v1090, %v1092
    %v1105 = vsel %vm276, %v1092, %v1094
    %v1106 = vsel %vm276, %v1094, %v1096
    %v1107 = vsel %vm276, %v1096, %v1098
    %v1108 = vsel %vm276, %v1098, %v1100
    %v1109 = vsel %vm276, %v1100, %v1102
    %v1118 = vadd.f32 %v1061, %v1103
    %v1119 = vadd.f32 %v1062, %v1104
    %v1120 = vadd.f32 %v1063, %v1105
    %v1121 = vadd.f32 %v1064, %v1106
    %v1122 = vadd.f32 %v1065, %v1107
    %v1123 = vadd.f32 %v1066, %v1108
    %v1124 = vadd.f32 %v1067, %v1109
    %v1125 = vadd.f32 %v1068, %v1102
    %s1126 = sld [smem:[#allocation8 + $0x13]]
    %v1127 = vstv %s1126
    %v1128 = vmul.f32 %v166, %v1127
    %v1129 = vmul.f32 %v167, %v1127
    %v1130 = vmul.f32 %v168, %v1127
    %v1131 = vmul.f32 %v169, %v1127
    %v1132 = vmul.f32 %v170, %v1127
    %v1133 = vmul.f32 %v171, %v1127
    %v1134 = vmul.f32 %v172, %v1127
    %v1135 = vmul.f32 %v173, %v1127
    %1144 = vrot.lane.b32.xlu0 %v1128, 96
    %v1145 = vpop.permute.xlu0 %1144
    %1146 = vrot.lane.b32.xlu0 %v1129, 96
    %v1147 = vpop.permute.xlu0 %1146
    %1148 = vrot.lane.b32.xlu0 %v1130, 96
    %v1149 = vpop.permute.xlu0 %1148
    %1150 = vrot.lane.b32.xlu0 %v1131, 96
    %v1151 = vpop.permute.xlu0 %1150
    %1152 = vrot.lane.b32.xlu0 %v1132, 96
    %v1153 = vpop.permute.xlu0 %1152
    %1154 = vrot.lane.b32.xlu0 %v1133, 96
    %v1155 = vpop.permute.xlu0 %1154
    %1156 = vrot.lane.b32.xlu0 %v1134, 96
    %v1157 = vpop.permute.xlu0 %1156
    %1158 = vrot.lane.b32.xlu0 %v1135, 96
    %v1159 = vpop.permute.xlu0 %1158
    %v1160 = vsel %vm334, %v1145, %v1147
    %v1161 = vsel %vm334, %v1147, %v1149
    %v1162 = vsel %vm334, %v1149, %v1151
    %v1163 = vsel %vm334, %v1151, %v1153
    %v1164 = vsel %vm334, %v1153, %v1155
    %v1165 = vsel %vm334, %v1155, %v1157
    %v1166 = vsel %vm334, %v1157, %v1159
    %v1175 = vadd.f32 %v1118, %v1160
    %v1176 = vadd.f32 %v1119, %v1161
    %v1177 = vadd.f32 %v1120, %v1162
    %v1178 = vadd.f32 %v1121, %v1163
    %v1179 = vadd.f32 %v1122, %v1164
    %v1180 = vadd.f32 %v1123, %v1165
    %v1181 = vadd.f32 %v1124, %v1166
    %v1182 = vadd.f32 %v1125, %v1159
    %v1183 = vsel %vm108, %v1175, -inf
    %v1184 = vsel %vm109, %v1176, -inf
    %v1185 = vsel %vm110, %v1177, -inf
    %v1186 = vsel %vm111, %v1178, -inf
    %v1187 = vsel %vm112, %v1179, -inf
    %v1188 = vsel %vm113, %v1180, -inf
    %v1189 = vsel %vm114, %v1181, -inf
    %v1190 = vsel %vm115, %v1182, -inf
    %v1191 = vmax.f32 %v1183, %v1187
    %v1192 = vmax.f32 %v1184, %v1188
    %v1193 = vmax.f32 %v1185, %v1189
    %v1194 = vsel %vm369, %v1190, -inf
    %v1195 = vmax.f32 %v1186, %v1194
    %v1196 = vmax.f32 %v1191, %v1192
    %v1197 = vmax.f32 %v1193, %v1195
    %v1198 = vmax.f32 %v1196, %v1197
    %1199 = vmax.xlane.f32.xlu0 %v1198
    %v1200 = vpop.xlane.xlu0 %1199
    %v1201 = vmax.f32 %v1200, 0.0
    %v1202 = vlaneseq
    %v1203 = vshrl.u32 %v1202, 7
    %v1204 = vsub.s32 4, %v1203
    %v1205 = vrot.slane %v116, %v1204
    %v1206 = vmul.f32 %v1201, %v1205
    %v1207 = vadd.f32 %v1001, %v1206
    %s1208 = sld [smem:[#allocation8 + $0x14]]
    %v1209 = vstv %s1208
    %v1210 = vmul.f32 %v166, %v1209
    %v1211 = vmul.f32 %v167, %v1209
    %v1212 = vmul.f32 %v168, %v1209
    %v1213 = vmul.f32 %v169, %v1209
    %v1214 = vmul.f32 %v170, %v1209
    %v1215 = vmul.f32 %v171, %v1209
    %v1216 = vmul.f32 %v172, %v1209
    %v1217 = vmul.f32 %v173, %v1209
    %s1218 = sld [smem:[#allocation8 + $0x15]]
    %v1219 = vstv %s1218
    %v1220 = vmul.f32 %v166, %v1219
    %v1221 = vmul.f32 %v167, %v1219
    %v1222 = vmul.f32 %v168, %v1219
    %v1223 = vmul.f32 %v169, %v1219
    %v1224 = vmul.f32 %v170, %v1219
    %v1225 = vmul.f32 %v171, %v1219
    %v1226 = vmul.f32 %v172, %v1219
    %v1227 = vmul.f32 %v173, %v1219
    %1236 = vrot.lane.b32.xlu0 %v1220, 127
    %v1237 = vpop.permute.xlu0 %1236
    %1238 = vrot.lane.b32.xlu0 %v1221, 127
    %v1239 = vpop.permute.xlu0 %1238
    %1240 = vrot.lane.b32.xlu0 %v1222, 127
    %v1241 = vpop.permute.xlu0 %1240
    %1242 = vrot.lane.b32.xlu0 %v1223, 127
    %v1243 = vpop.permute.xlu0 %1242
    %1244 = vrot.lane.b32.xlu0 %v1224, 127
    %v1245 = vpop.permute.xlu0 %1244
    %1246 = vrot.lane.b32.xlu0 %v1225, 127
    %v1247 = vpop.permute.xlu0 %1246
    %1248 = vrot.lane.b32.xlu0 %v1226, 127
    %v1249 = vpop.permute.xlu0 %1248
    %1250 = vrot.lane.b32.xlu0 %v1227, 127
    %v1251 = vpop.permute.xlu0 %1250
    %v1252 = vsel %vm218, %v1237, %v1239
    %v1253 = vsel %vm218, %v1239, %v1241
    %v1254 = vsel %vm218, %v1241, %v1243
    %v1255 = vsel %vm218, %v1243, %v1245
    %v1256 = vsel %vm218, %v1245, %v1247
    %v1257 = vsel %vm218, %v1247, %v1249
    %v1258 = vsel %vm218, %v1249, %v1251
    %v1267 = vadd.f32 %v1210, %v1252
    %v1268 = vadd.f32 %v1211, %v1253
    %v1269 = vadd.f32 %v1212, %v1254
    %v1270 = vadd.f32 %v1213, %v1255
    %v1271 = vadd.f32 %v1214, %v1256
    %v1272 = vadd.f32 %v1215, %v1257
    %v1273 = vadd.f32 %v1216, %v1258
    %v1274 = vadd.f32 %v1217, %v1251
    %s1275 = sld [smem:[#allocation8 + $0x16]]
    %v1276 = vstv %s1275
    %v1277 = vmul.f32 %v166, %v1276
    %v1278 = vmul.f32 %v167, %v1276
    %v1279 = vmul.f32 %v168, %v1276
    %v1280 = vmul.f32 %v169, %v1276
    %v1281 = vmul.f32 %v170, %v1276
    %v1282 = vmul.f32 %v171, %v1276
    %v1283 = vmul.f32 %v172, %v1276
    %v1284 = vmul.f32 %v173, %v1276
    %1293 = vrot.lane.b32.xlu0 %v1277, 97
    %v1294 = vpop.permute.xlu0 %1293
    %1295 = vrot.lane.b32.xlu0 %v1278, 97
    %v1296 = vpop.permute.xlu0 %1295
    %1297 = vrot.lane.b32.xlu0 %v1279, 97
    %v1298 = vpop.permute.xlu0 %1297
    %1299 = vrot.lane.b32.xlu0 %v1280, 97
    %v1300 = vpop.permute.xlu0 %1299
    %1301 = vrot.lane.b32.xlu0 %v1281, 97
    %v1302 = vpop.permute.xlu0 %1301
    %1303 = vrot.lane.b32.xlu0 %v1282, 97
    %v1304 = vpop.permute.xlu0 %1303
    %1305 = vrot.lane.b32.xlu0 %v1283, 97
    %v1306 = vpop.permute.xlu0 %1305
    %1307 = vrot.lane.b32.xlu0 %v1284, 97
    %v1308 = vpop.permute.xlu0 %1307
    %v1309 = vsel %vm276, %v1294, %v1296
    %v1310 = vsel %vm276, %v1296, %v1298
    %v1311 = vsel %vm276, %v1298, %v1300
    %v1312 = vsel %vm276, %v1300, %v1302
    %v1313 = vsel %vm276, %v1302, %v1304
    %v1314 = vsel %vm276, %v1304, %v1306
    %v1315 = vsel %vm276, %v1306, %v1308
    %v1324 = vadd.f32 %v1267, %v1309
    %v1325 = vadd.f32 %v1268, %v1310
    %v1326 = vadd.f32 %v1269, %v1311
    %v1327 = vadd.f32 %v1270, %v1312
    %v1328 = vadd.f32 %v1271, %v1313
    %v1329 = vadd.f32 %v1272, %v1314
    %v1330 = vadd.f32 %v1273, %v1315
    %v1331 = vadd.f32 %v1274, %v1308
    %s1332 = sld [smem:[#allocation8 + $0x17]]
    %v1333 = vstv %s1332
    %v1334 = vmul.f32 %v166, %v1333
    %v1335 = vmul.f32 %v167, %v1333
    %v1336 = vmul.f32 %v168, %v1333
    %v1337 = vmul.f32 %v169, %v1333
    %v1338 = vmul.f32 %v170, %v1333
    %v1339 = vmul.f32 %v171, %v1333
    %v1340 = vmul.f32 %v172, %v1333
    %v1341 = vmul.f32 %v173, %v1333
    %1350 = vrot.lane.b32.xlu0 %v1334, 96
    %v1351 = vpop.permute.xlu0 %1350
    %1352 = vrot.lane.b32.xlu0 %v1335, 96
    %v1353 = vpop.permute.xlu0 %1352
    %1354 = vrot.lane.b32.xlu0 %v1336, 96
    %v1355 = vpop.permute.xlu0 %1354
    %1356 = vrot.lane.b32.xlu0 %v1337, 96
    %v1357 = vpop.permute.xlu0 %1356
    %1358 = vrot.lane.b32.xlu0 %v1338, 96
    %v1359 = vpop.permute.xlu0 %1358
    %1360 = vrot.lane.b32.xlu0 %v1339, 96
    %v1361 = vpop.permute.xlu0 %1360
    %1362 = vrot.lane.b32.xlu0 %v1340, 96
    %v1363 = vpop.permute.xlu0 %1362
    %1364 = vrot.lane.b32.xlu0 %v1341, 96
    %v1365 = vpop.permute.xlu0 %1364
    %v1366 = vsel %vm334, %v1351, %v1353
    %v1367 = vsel %vm334, %v1353, %v1355
    %v1368 = vsel %vm334, %v1355, %v1357
    %v1369 = vsel %vm334, %v1357, %v1359
    %v1370 = vsel %vm334, %v1359, %v1361
    %v1371 = vsel %vm334, %v1361, %v1363
    %v1372 = vsel %vm334, %v1363, %v1365
    %v1381 = vadd.f32 %v1324, %v1366
    %v1382 = vadd.f32 %v1325, %v1367
    %v1383 = vadd.f32 %v1326, %v1368
    %v1384 = vadd.f32 %v1327, %v1369
    %v1385 = vadd.f32 %v1328, %v1370
    %v1386 = vadd.f32 %v1329, %v1371
    %v1387 = vadd.f32 %v1330, %v1372
    %v1388 = vadd.f32 %v1331, %v1365
    %v1389 = vsel %vm108, %v1381, -inf
    %v1390 = vsel %vm109, %v1382, -inf
    %v1391 = vsel %vm110, %v1383, -inf
    %v1392 = vsel %vm111, %v1384, -inf
    %v1393 = vsel %vm112, %v1385, -inf
    %v1394 = vsel %vm113, %v1386, -inf
    %v1395 = vsel %vm114, %v1387, -inf
    %v1396 = vsel %vm115, %v1388, -inf
    %v1397 = vmax.f32 %v1389, %v1393
    %v1398 = vmax.f32 %v1390, %v1394
    %v1399 = vmax.f32 %v1391, %v1395
    %v1400 = vsel %vm369, %v1396, -inf
    %v1401 = vmax.f32 %v1392, %v1400
    %v1402 = vmax.f32 %v1397, %v1398
    %v1403 = vmax.f32 %v1399, %v1401
    %v1404 = vmax.f32 %v1402, %v1403
    %1405 = vmax.xlane.f32.xlu0 %v1404
    %v1406 = vpop.xlane.xlu0 %1405
    %v1407 = vmax.f32 %v1406, 0.0
    %v1408 = vlaneseq
    %v1409 = vshrl.u32 %v1408, 7
    %v1410 = vsub.s32 5, %v1409
    %v1411 = vrot.slane %v116, %v1410
    %v1412 = vmul.f32 %v1407, %v1411
    %v1413 = vadd.f32 %v1207, %v1412
    %s1414 = sld [smem:[#allocation8 + $0x18]]
    %v1415 = vstv %s1414
    %v1416 = vmul.f32 %v166, %v1415
    %v1417 = vmul.f32 %v167, %v1415
    %v1418 = vmul.f32 %v168, %v1415
    %v1419 = vmul.f32 %v169, %v1415
    %v1420 = vmul.f32 %v170, %v1415
    %v1421 = vmul.f32 %v171, %v1415
    %v1422 = vmul.f32 %v172, %v1415
    %v1423 = vmul.f32 %v173, %v1415
    %s1424 = sld [smem:[#allocation8 + $0x19]]
    %v1425 = vstv %s1424
    %v1426 = vmul.f32 %v166, %v1425
    %v1427 = vmul.f32 %v167, %v1425
    %v1428 = vmul.f32 %v168, %v1425
    %v1429 = vmul.f32 %v169, %v1425
    %v1430 = vmul.f32 %v170, %v1425
    %v1431 = vmul.f32 %v171, %v1425
    %v1432 = vmul.f32 %v172, %v1425
    %v1433 = vmul.f32 %v173, %v1425
    %1442 = vrot.lane.b32.xlu0 %v1426, 127
    %v1443 = vpop.permute.xlu0 %1442
    %1444 = vrot.lane.b32.xlu0 %v1427, 127
    %v1445 = vpop.permute.xlu0 %1444
    %1446 = vrot.lane.b32.xlu0 %v1428, 127
    %v1447 = vpop.permute.xlu0 %1446
    %1448 = vrot.lane.b32.xlu0 %v1429, 127
    %v1449 = vpop.permute.xlu0 %1448
    %1450 = vrot.lane.b32.xlu0 %v1430, 127
    %v1451 = vpop.permute.xlu0 %1450
    %1452 = vrot.lane.b32.xlu0 %v1431, 127
    %v1453 = vpop.permute.xlu0 %1452
    %1454 = vrot.lane.b32.xlu0 %v1432, 127
    %v1455 = vpop.permute.xlu0 %1454
    %1456 = vrot.lane.b32.xlu0 %v1433, 127
    %v1457 = vpop.permute.xlu0 %1456
    %v1458 = vsel %vm218, %v1443, %v1445
    %v1459 = vsel %vm218, %v1445, %v1447
    %v1460 = vsel %vm218, %v1447, %v1449
    %v1461 = vsel %vm218, %v1449, %v1451
    %v1462 = vsel %vm218, %v1451, %v1453
    %v1463 = vsel %vm218, %v1453, %v1455
    %v1464 = vsel %vm218, %v1455, %v1457
    %v1473 = vadd.f32 %v1416, %v1458
    %v1474 = vadd.f32 %v1417, %v1459
    %v1475 = vadd.f32 %v1418, %v1460
    %v1476 = vadd.f32 %v1419, %v1461
    %v1477 = vadd.f32 %v1420, %v1462
    %v1478 = vadd.f32 %v1421, %v1463
    %v1479 = vadd.f32 %v1422, %v1464
    %v1480 = vadd.f32 %v1423, %v1457
    %s1481 = sld [smem:[#allocation8 + $0x1a]]
    %v1482 = vstv %s1481
    %v1483 = vmul.f32 %v166, %v1482
    %v1484 = vmul.f32 %v167, %v1482
    %v1485 = vmul.f32 %v168, %v1482
    %v1486 = vmul.f32 %v169, %v1482
    %v1487 = vmul.f32 %v170, %v1482
    %v1488 = vmul.f32 %v171, %v1482
    %v1489 = vmul.f32 %v172, %v1482
    %v1490 = vmul.f32 %v173, %v1482
    %1499 = vrot.lane.b32.xlu0 %v1483, 97
    %v1500 = vpop.permute.xlu0 %1499
    %1501 = vrot.lane.b32.xlu0 %v1484, 97
    %v1502 = vpop.permute.xlu0 %1501
    %1503 = vrot.lane.b32.xlu0 %v1485, 97
    %v1504 = vpop.permute.xlu0 %1503
    %1505 = vrot.lane.b32.xlu0 %v1486, 97
    %v1506 = vpop.permute.xlu0 %1505
    %1507 = vrot.lane.b32.xlu0 %v1487, 97
    %v1508 = vpop.permute.xlu0 %1507
    %1509 = vrot.lane.b32.xlu0 %v1488, 97
    %v1510 = vpop.permute.xlu0 %1509
    %1511 = vrot.lane.b32.xlu0 %v1489, 97
    %v1512 = vpop.permute.xlu0 %1511
    %1513 = vrot.lane.b32.xlu0 %v1490, 97
    %v1514 = vpop.permute.xlu0 %1513
    %v1515 = vsel %vm276, %v1500, %v1502
    %v1516 = vsel %vm276, %v1502, %v1504
    %v1517 = vsel %vm276, %v1504, %v1506
    %v1518 = vsel %vm276, %v1506, %v1508
    %v1519 = vsel %vm276, %v1508, %v1510
    %v1520 = vsel %vm276, %v1510, %v1512
    %v1521 = vsel %vm276, %v1512, %v1514
    %v1530 = vadd.f32 %v1473, %v1515
    %v1531 = vadd.f32 %v1474, %v1516
    %v1532 = vadd.f32 %v1475, %v1517
    %v1533 = vadd.f32 %v1476, %v1518
    %v1534 = vadd.f32 %v1477, %v1519
    %v1535 = vadd.f32 %v1478, %v1520
    %v1536 = vadd.f32 %v1479, %v1521
    %v1537 = vadd.f32 %v1480, %v1514
    %s1538 = sld [smem:[#allocation8 + $0x1b]]
    %v1539 = vstv %s1538
    %v1540 = vmul.f32 %v166, %v1539
    %v1541 = vmul.f32 %v167, %v1539
    %v1542 = vmul.f32 %v168, %v1539
    %v1543 = vmul.f32 %v169, %v1539
    %v1544 = vmul.f32 %v170, %v1539
    %v1545 = vmul.f32 %v171, %v1539
    %v1546 = vmul.f32 %v172, %v1539
    %v1547 = vmul.f32 %v173, %v1539
    %1556 = vrot.lane.b32.xlu0 %v1540, 96
    %v1557 = vpop.permute.xlu0 %1556
    %1558 = vrot.lane.b32.xlu0 %v1541, 96
    %v1559 = vpop.permute.xlu0 %1558
    %1560 = vrot.lane.b32.xlu0 %v1542, 96
    %v1561 = vpop.permute.xlu0 %1560
    %1562 = vrot.lane.b32.xlu0 %v1543, 96
    %v1563 = vpop.permute.xlu0 %1562
    %1564 = vrot.lane.b32.xlu0 %v1544, 96
    %v1565 = vpop.permute.xlu0 %1564
    %1566 = vrot.lane.b32.xlu0 %v1545, 96
    %v1567 = vpop.permute.xlu0 %1566
    %1568 = vrot.lane.b32.xlu0 %v1546, 96
    %v1569 = vpop.permute.xlu0 %1568
    %1570 = vrot.lane.b32.xlu0 %v1547, 96
    %v1571 = vpop.permute.xlu0 %1570
    %v1572 = vsel %vm334, %v1557, %v1559
    %v1573 = vsel %vm334, %v1559, %v1561
    %v1574 = vsel %vm334, %v1561, %v1563
    %v1575 = vsel %vm334, %v1563, %v1565
    %v1576 = vsel %vm334, %v1565, %v1567
    %v1577 = vsel %vm334, %v1567, %v1569
    %v1578 = vsel %vm334, %v1569, %v1571
    %v1587 = vadd.f32 %v1530, %v1572
    %v1588 = vadd.f32 %v1531, %v1573
    %v1589 = vadd.f32 %v1532, %v1574
    %v1590 = vadd.f32 %v1533, %v1575
    %v1591 = vadd.f32 %v1534, %v1576
    %v1592 = vadd.f32 %v1535, %v1577
    %v1593 = vadd.f32 %v1536, %v1578
    %v1594 = vadd.f32 %v1537, %v1571
    %v1595 = vsel %vm108, %v1587, -inf
    %v1596 = vsel %vm109, %v1588, -inf
    %v1597 = vsel %vm110, %v1589, -inf
    %v1598 = vsel %vm111, %v1590, -inf
    %v1599 = vsel %vm112, %v1591, -inf
    %v1600 = vsel %vm113, %v1592, -inf
    %v1601 = vsel %vm114, %v1593, -inf
    %v1602 = vsel %vm115, %v1594, -inf
    %v1603 = vmax.f32 %v1595, %v1599
    %v1604 = vmax.f32 %v1596, %v1600
    %v1605 = vmax.f32 %v1597, %v1601
    %v1606 = vsel %vm369, %v1602, -inf
    %v1607 = vmax.f32 %v1598, %v1606
    %v1608 = vmax.f32 %v1603, %v1604
    %v1609 = vmax.f32 %v1605, %v1607
    %v1610 = vmax.f32 %v1608, %v1609
    %1611 = vmax.xlane.f32.xlu0 %v1610
    %v1612 = vpop.xlane.xlu0 %1611
    %v1613 = vmax.f32 %v1612, 0.0
    %v1614 = vlaneseq
    %v1615 = vshrl.u32 %v1614, 7
    %v1616 = vsub.s32 6, %v1615
    %v1617 = vrot.slane %v116, %v1616
    %v1618 = vmul.f32 %v1613, %v1617
    %v1619 = vadd.f32 %v1413, %v1618
    %s1620 = sld [smem:[#allocation8 + $0x1c]]
    %v1621 = vstv %s1620
    %v1622 = vmul.f32 %v166, %v1621
    %v1623 = vmul.f32 %v167, %v1621
    %v1624 = vmul.f32 %v168, %v1621
    %v1625 = vmul.f32 %v169, %v1621
    %v1626 = vmul.f32 %v170, %v1621
    %v1627 = vmul.f32 %v171, %v1621
    %v1628 = vmul.f32 %v172, %v1621
    %v1629 = vmul.f32 %v173, %v1621
    %s1630 = sld [smem:[#allocation8 + $0x1d]]
    %v1631 = vstv %s1630
    %v1632 = vmul.f32 %v166, %v1631
    %v1633 = vmul.f32 %v167, %v1631
    %v1634 = vmul.f32 %v168, %v1631
    %v1635 = vmul.f32 %v169, %v1631
    %v1636 = vmul.f32 %v170, %v1631
    %v1637 = vmul.f32 %v171, %v1631
    %v1638 = vmul.f32 %v172, %v1631
    %v1639 = vmul.f32 %v173, %v1631
    %1648 = vrot.lane.b32.xlu0 %v1632, 127
    %v1649 = vpop.permute.xlu0 %1648
    %1650 = vrot.lane.b32.xlu0 %v1633, 127
    %v1651 = vpop.permute.xlu0 %1650
    %1652 = vrot.lane.b32.xlu0 %v1634, 127
    %v1653 = vpop.permute.xlu0 %1652
    %1654 = vrot.lane.b32.xlu0 %v1635, 127
    %v1655 = vpop.permute.xlu0 %1654
    %1656 = vrot.lane.b32.xlu0 %v1636, 127
    %v1657 = vpop.permute.xlu0 %1656
    %1658 = vrot.lane.b32.xlu0 %v1637, 127
    %v1659 = vpop.permute.xlu0 %1658
    %1660 = vrot.lane.b32.xlu0 %v1638, 127
    %v1661 = vpop.permute.xlu0 %1660
    %1662 = vrot.lane.b32.xlu0 %v1639, 127
    %v1663 = vpop.permute.xlu0 %1662
    %v1664 = vsel %vm218, %v1649, %v1651
    %v1665 = vsel %vm218, %v1651, %v1653
    %v1666 = vsel %vm218, %v1653, %v1655
    %v1667 = vsel %vm218, %v1655, %v1657
    %v1668 = vsel %vm218, %v1657, %v1659
    %v1669 = vsel %vm218, %v1659, %v1661
    %v1670 = vsel %vm218, %v1661, %v1663
    %v1679 = vadd.f32 %v1622, %v1664
    %v1680 = vadd.f32 %v1623, %v1665
    %v1681 = vadd.f32 %v1624, %v1666
    %v1682 = vadd.f32 %v1625, %v1667
    %v1683 = vadd.f32 %v1626, %v1668
    %v1684 = vadd.f32 %v1627, %v1669
    %v1685 = vadd.f32 %v1628, %v1670
    %v1686 = vadd.f32 %v1629, %v1663
    %s1687 = sld [smem:[#allocation8 + $0x1e]]
    %v1688 = vstv %s1687
    %v1689 = vmul.f32 %v166, %v1688
    %v1690 = vmul.f32 %v167, %v1688
    %v1691 = vmul.f32 %v168, %v1688
    %v1692 = vmul.f32 %v169, %v1688
    %v1693 = vmul.f32 %v170, %v1688
    %v1694 = vmul.f32 %v171, %v1688
    %v1695 = vmul.f32 %v172, %v1688
    %v1696 = vmul.f32 %v173, %v1688
    %1705 = vrot.lane.b32.xlu0 %v1689, 97
    %v1706 = vpop.permute.xlu0 %1705
    %1707 = vrot.lane.b32.xlu0 %v1690, 97
    %v1708 = vpop.permute.xlu0 %1707
    %1709 = vrot.lane.b32.xlu0 %v1691, 97
    %v1710 = vpop.permute.xlu0 %1709
    %1711 = vrot.lane.b32.xlu0 %v1692, 97
    %v1712 = vpop.permute.xlu0 %1711
    %1713 = vrot.lane.b32.xlu0 %v1693, 97
    %v1714 = vpop.permute.xlu0 %1713
    %1715 = vrot.lane.b32.xlu0 %v1694, 97
    %v1716 = vpop.permute.xlu0 %1715
    %1717 = vrot.lane.b32.xlu0 %v1695, 97
    %v1718 = vpop.permute.xlu0 %1717
    %1719 = vrot.lane.b32.xlu0 %v1696, 97
    %v1720 = vpop.permute.xlu0 %1719
    %v1721 = vsel %vm276, %v1706, %v1708
    %v1722 = vsel %vm276, %v1708, %v1710
    %v1723 = vsel %vm276, %v1710, %v1712
    %v1724 = vsel %vm276, %v1712, %v1714
    %v1725 = vsel %vm276, %v1714, %v1716
    %v1726 = vsel %vm276, %v1716, %v1718
    %v1727 = vsel %vm276, %v1718, %v1720
    %v1736 = vadd.f32 %v1679, %v1721
    %v1737 = vadd.f32 %v1680, %v1722
    %v1738 = vadd.f32 %v1681, %v1723
    %v1739 = vadd.f32 %v1682, %v1724
    %v1740 = vadd.f32 %v1683, %v1725
    %v1741 = vadd.f32 %v1684, %v1726
    %v1742 = vadd.f32 %v1685, %v1727
    %v1743 = vadd.f32 %v1686, %v1720
    %s1744 = sld [smem:[#allocation8 + $0x1f]]
    %v1745 = vstv %s1744
    %v1746 = vmul.f32 %v166, %v1745
    %v1747 = vmul.f32 %v167, %v1745
    %v1748 = vmul.f32 %v168, %v1745
    %v1749 = vmul.f32 %v169, %v1745
    %v1750 = vmul.f32 %v170, %v1745
    %v1751 = vmul.f32 %v171, %v1745
    %v1752 = vmul.f32 %v172, %v1745
    %v1753 = vmul.f32 %v173, %v1745
    %1762 = vrot.lane.b32.xlu0 %v1746, 96
    %v1763 = vpop.permute.xlu0 %1762
    %1764 = vrot.lane.b32.xlu0 %v1747, 96
    %v1765 = vpop.permute.xlu0 %1764
    %1766 = vrot.lane.b32.xlu0 %v1748, 96
    %v1767 = vpop.permute.xlu0 %1766
    %1768 = vrot.lane.b32.xlu0 %v1749, 96
    %v1769 = vpop.permute.xlu0 %1768
    %1770 = vrot.lane.b32.xlu0 %v1750, 96
    %v1771 = vpop.permute.xlu0 %1770
    %1772 = vrot.lane.b32.xlu0 %v1751, 96
    %v1773 = vpop.permute.xlu0 %1772
    %1774 = vrot.lane.b32.xlu0 %v1752, 96
    %v1775 = vpop.permute.xlu0 %1774
    %1776 = vrot.lane.b32.xlu0 %v1753, 96
    %v1777 = vpop.permute.xlu0 %1776
    %v1778 = vsel %vm334, %v1763, %v1765
    %v1779 = vsel %vm334, %v1765, %v1767
    %v1780 = vsel %vm334, %v1767, %v1769
    %v1781 = vsel %vm334, %v1769, %v1771
    %v1782 = vsel %vm334, %v1771, %v1773
    %v1783 = vsel %vm334, %v1773, %v1775
    %v1784 = vsel %vm334, %v1775, %v1777
    %v1793 = vadd.f32 %v1736, %v1778
    %v1794 = vadd.f32 %v1737, %v1779
    %v1795 = vadd.f32 %v1738, %v1780
    %v1796 = vadd.f32 %v1739, %v1781
    %v1797 = vadd.f32 %v1740, %v1782
    %v1798 = vadd.f32 %v1741, %v1783
    %v1799 = vadd.f32 %v1742, %v1784
    %v1800 = vadd.f32 %v1743, %v1777
    %v1801 = vsel %vm108, %v1793, -inf
    %v1802 = vsel %vm109, %v1794, -inf
    %v1803 = vsel %vm110, %v1795, -inf
    %v1804 = vsel %vm111, %v1796, -inf
    %v1805 = vsel %vm112, %v1797, -inf
    %v1806 = vsel %vm113, %v1798, -inf
    %v1807 = vsel %vm114, %v1799, -inf
    %v1808 = vsel %vm115, %v1800, -inf
    %v1809 = vmax.f32 %v1801, %v1805
    %v1810 = vmax.f32 %v1802, %v1806
    %v1811 = vmax.f32 %v1803, %v1807
    %v1812 = vsel %vm369, %v1808, -inf
    %v1813 = vmax.f32 %v1804, %v1812
    %v1814 = vmax.f32 %v1809, %v1810
    %v1815 = vmax.f32 %v1811, %v1813
    %v1816 = vmax.f32 %v1814, %v1815
    %1817 = vmax.xlane.f32.xlu0 %v1816
    %v1818 = vpop.xlane.xlu0 %1817
    %v1819 = vmax.f32 %v1818, 0.0
    %v1820 = vlaneseq
    %v1821 = vshrl.u32 %v1820, 7
    %v1822 = vsub.s32 7, %v1821
    %v1823 = vrot.slane %v116, %v1822
    %v1824 = vmul.f32 %v1819, %v1823
    %v1825 = vadd.f32 %v1619, %v1824
    %s1826 = sld [smem:[#allocation8 + $0x20]]
    %v1827 = vstv %s1826
    %v1828 = vmul.f32 %v166, %v1827
    %v1829 = vmul.f32 %v167, %v1827
    %v1830 = vmul.f32 %v168, %v1827
    %v1831 = vmul.f32 %v169, %v1827
    %v1832 = vmul.f32 %v170, %v1827
    %v1833 = vmul.f32 %v171, %v1827
    %v1834 = vmul.f32 %v172, %v1827
    %v1835 = vmul.f32 %v173, %v1827
    %s1836 = sld [smem:[#allocation8 + $0x21]]
    %v1837 = vstv %s1836
    %v1838 = vmul.f32 %v166, %v1837
    %v1839 = vmul.f32 %v167, %v1837
    %v1840 = vmul.f32 %v168, %v1837
    %v1841 = vmul.f32 %v169, %v1837
    %v1842 = vmul.f32 %v170, %v1837
    %v1843 = vmul.f32 %v171, %v1837
    %v1844 = vmul.f32 %v172, %v1837
    %v1845 = vmul.f32 %v173, %v1837
    %1854 = vrot.lane.b32.xlu0 %v1838, 127
    %v1855 = vpop.permute.xlu0 %1854
    %1856 = vrot.lane.b32.xlu0 %v1839, 127
    %v1857 = vpop.permute.xlu0 %1856
    %1858 = vrot.lane.b32.xlu0 %v1840, 127
    %v1859 = vpop.permute.xlu0 %1858
    %1860 = vrot.lane.b32.xlu0 %v1841, 127
    %v1861 = vpop.permute.xlu0 %1860
    %1862 = vrot.lane.b32.xlu0 %v1842, 127
    %v1863 = vpop.permute.xlu0 %1862
    %1864 = vrot.lane.b32.xlu0 %v1843, 127
    %v1865 = vpop.permute.xlu0 %1864
    %1866 = vrot.lane.b32.xlu0 %v1844, 127
    %v1867 = vpop.permute.xlu0 %1866
    %1868 = vrot.lane.b32.xlu0 %v1845, 127
    %v1869 = vpop.permute.xlu0 %1868
    %v1870 = vsel %vm218, %v1855, %v1857
    %v1871 = vsel %vm218, %v1857, %v1859
    %v1872 = vsel %vm218, %v1859, %v1861
    %v1873 = vsel %vm218, %v1861, %v1863
    %v1874 = vsel %vm218, %v1863, %v1865
    %v1875 = vsel %vm218, %v1865, %v1867
    %v1876 = vsel %vm218, %v1867, %v1869
    %v1885 = vadd.f32 %v1828, %v1870
    %v1886 = vadd.f32 %v1829, %v1871
    %v1887 = vadd.f32 %v1830, %v1872
    %v1888 = vadd.f32 %v1831, %v1873
    %v1889 = vadd.f32 %v1832, %v1874
    %v1890 = vadd.f32 %v1833, %v1875
    %v1891 = vadd.f32 %v1834, %v1876
    %v1892 = vadd.f32 %v1835, %v1869
    %s1893 = sld [smem:[#allocation8 + $0x22]]
    %v1894 = vstv %s1893
    %v1895 = vmul.f32 %v166, %v1894
    %v1896 = vmul.f32 %v167, %v1894
    %v1897 = vmul.f32 %v168, %v1894
    %v1898 = vmul.f32 %v169, %v1894
    %v1899 = vmul.f32 %v170, %v1894
    %v1900 = vmul.f32 %v171, %v1894
    %v1901 = vmul.f32 %v172, %v1894
    %v1902 = vmul.f32 %v173, %v1894
    %1911 = vrot.lane.b32.xlu0 %v1895, 97
    %v1912 = vpop.permute.xlu0 %1911
    %1913 = vrot.lane.b32.xlu0 %v1896, 97
    %v1914 = vpop.permute.xlu0 %1913
    %1915 = vrot.lane.b32.xlu0 %v1897, 97
    %v1916 = vpop.permute.xlu0 %1915
    %1917 = vrot.lane.b32.xlu0 %v1898, 97
    %v1918 = vpop.permute.xlu0 %1917
    %1919 = vrot.lane.b32.xlu0 %v1899, 97
    %v1920 = vpop.permute.xlu0 %1919
    %1921 = vrot.lane.b32.xlu0 %v1900, 97
    %v1922 = vpop.permute.xlu0 %1921
    %1923 = vrot.lane.b32.xlu0 %v1901, 97
    %v1924 = vpop.permute.xlu0 %1923
    %1925 = vrot.lane.b32.xlu0 %v1902, 97
    %v1926 = vpop.permute.xlu0 %1925
    %v1927 = vsel %vm276, %v1912, %v1914
    %v1928 = vsel %vm276, %v1914, %v1916
    %v1929 = vsel %vm276, %v1916, %v1918
    %v1930 = vsel %vm276, %v1918, %v1920
    %v1931 = vsel %vm276, %v1920, %v1922
    %v1932 = vsel %vm276, %v1922, %v1924
    %v1933 = vsel %vm276, %v1924, %v1926
    %v1942 = vadd.f32 %v1885, %v1927
    %v1943 = vadd.f32 %v1886, %v1928
    %v1944 = vadd.f32 %v1887, %v1929
    %v1945 = vadd.f32 %v1888, %v1930
    %v1946 = vadd.f32 %v1889, %v1931
    %v1947 = vadd.f32 %v1890, %v1932
    %v1948 = vadd.f32 %v1891, %v1933
    %v1949 = vadd.f32 %v1892, %v1926
    %s1950 = sld [smem:[#allocation8 + $0x23]]
    %v1951 = vstv %s1950
    %v1952 = vmul.f32 %v166, %v1951
    %v1953 = vmul.f32 %v167, %v1951
    %v1954 = vmul.f32 %v168, %v1951
    %v1955 = vmul.f32 %v169, %v1951
    %v1956 = vmul.f32 %v170, %v1951
    %v1957 = vmul.f32 %v171, %v1951
    %v1958 = vmul.f32 %v172, %v1951
    %v1959 = vmul.f32 %v173, %v1951
    %1968 = vrot.lane.b32.xlu0 %v1952, 96
    %v1969 = vpop.permute.xlu0 %1968
    %1970 = vrot.lane.b32.xlu0 %v1953, 96
    %v1971 = vpop.permute.xlu0 %1970
    %1972 = vrot.lane.b32.xlu0 %v1954, 96
    %v1973 = vpop.permute.xlu0 %1972
    %1974 = vrot.lane.b32.xlu0 %v1955, 96
    %v1975 = vpop.permute.xlu0 %1974
    %1976 = vrot.lane.b32.xlu0 %v1956, 96
    %v1977 = vpop.permute.xlu0 %1976
    %1978 = vrot.lane.b32.xlu0 %v1957, 96
    %v1979 = vpop.permute.xlu0 %1978
    %1980 = vrot.lane.b32.xlu0 %v1958, 96
    %v1981 = vpop.permute.xlu0 %1980
    %1982 = vrot.lane.b32.xlu0 %v1959, 96
    %v1983 = vpop.permute.xlu0 %1982
    %v1984 = vsel %vm334, %v1969, %v1971
    %v1985 = vsel %vm334, %v1971, %v1973
    %v1986 = vsel %vm334, %v1973, %v1975
    %v1987 = vsel %vm334, %v1975, %v1977
    %v1988 = vsel %vm334, %v1977, %v1979
    %v1989 = vsel %vm334, %v1979, %v1981
    %v1990 = vsel %vm334, %v1981, %v1983
    %v1999 = vadd.f32 %v1942, %v1984
    %v2000 = vadd.f32 %v1943, %v1985
    %v2001 = vadd.f32 %v1944, %v1986
    %v2002 = vadd.f32 %v1945, %v1987
    %v2003 = vadd.f32 %v1946, %v1988
    %v2004 = vadd.f32 %v1947, %v1989
    %v2005 = vadd.f32 %v1948, %v1990
    %v2006 = vadd.f32 %v1949, %v1983
    %v2007 = vsel %vm108, %v1999, -inf
    %v2008 = vsel %vm109, %v2000, -inf
    %v2009 = vsel %vm110, %v2001, -inf
    %v2010 = vsel %vm111, %v2002, -inf
    %v2011 = vsel %vm112, %v2003, -inf
    %v2012 = vsel %vm113, %v2004, -inf
    %v2013 = vsel %vm114, %v2005, -inf
    %v2014 = vsel %vm115, %v2006, -inf
    %v2015 = vmax.f32 %v2007, %v2011
    %v2016 = vmax.f32 %v2008, %v2012
    %v2017 = vmax.f32 %v2009, %v2013
    %v2018 = vsel %vm369, %v2014, -inf
    %v2019 = vmax.f32 %v2010, %v2018
    %v2020 = vmax.f32 %v2015, %v2016
    %v2021 = vmax.f32 %v2017, %v2019
    %v2022 = vmax.f32 %v2020, %v2021
    %2023 = vmax.xlane.f32.xlu0 %v2022
    %v2024 = vpop.xlane.xlu0 %2023
    %v2025 = vmax.f32 %v2024, 0.0
    %v2026 = vlaneseq
    %v2027 = vshrl.u32 %v2026, 7
    %v2028 = vsub.s32 0, %v2027
    %v2029 = vrot.slane %v117, %v2028
    %v2030 = vmul.f32 %v2025, %v2029
    %v2031 = vadd.f32 %v1825, %v2030
    %s2032 = sld [smem:[#allocation8 + $0x24]]
    %v2033 = vstv %s2032
    %v2034 = vmul.f32 %v166, %v2033
    %v2035 = vmul.f32 %v167, %v2033
    %v2036 = vmul.f32 %v168, %v2033
    %v2037 = vmul.f32 %v169, %v2033
    %v2038 = vmul.f32 %v170, %v2033
    %v2039 = vmul.f32 %v171, %v2033
    %v2040 = vmul.f32 %v172, %v2033
    %v2041 = vmul.f32 %v173, %v2033
    %s2042 = sld [smem:[#allocation8 + $0x25]]
    %v2043 = vstv %s2042
    %v2044 = vmul.f32 %v166, %v2043
    %v2045 = vmul.f32 %v167, %v2043
    %v2046 = vmul.f32 %v168, %v2043
    %v2047 = vmul.f32 %v169, %v2043
    %v2048 = vmul.f32 %v170, %v2043
    %v2049 = vmul.f32 %v171, %v2043
    %v2050 = vmul.f32 %v172, %v2043
    %v2051 = vmul.f32 %v173, %v2043
    %2060 = vrot.lane.b32.xlu0 %v2044, 127
    %v2061 = vpop.permute.xlu0 %2060
    %2062 = vrot.lane.b32.xlu0 %v2045, 127
    %v2063 = vpop.permute.xlu0 %2062
    %2064 = vrot.lane.b32.xlu0 %v2046, 127
    %v2065 = vpop.permute.xlu0 %2064
    %2066 = vrot.lane.b32.xlu0 %v2047, 127
    %v2067 = vpop.permute.xlu0 %2066
    %2068 = vrot.lane.b32.xlu0 %v2048, 127
    %v2069 = vpop.permute.xlu0 %2068
    %2070 = vrot.lane.b32.xlu0 %v2049, 127
    %v2071 = vpop.permute.xlu0 %2070
    %2072 = vrot.lane.b32.xlu0 %v2050, 127
    %v2073 = vpop.permute.xlu0 %2072
    %2074 = vrot.lane.b32.xlu0 %v2051, 127
    %v2075 = vpop.permute.xlu0 %2074
    %v2076 = vsel %vm218, %v2061, %v2063
    %v2077 = vsel %vm218, %v2063, %v2065
    %v2078 = vsel %vm218, %v2065, %v2067
    %v2079 = vsel %vm218, %v2067, %v2069
    %v2080 = vsel %vm218, %v2069, %v2071
    %v2081 = vsel %vm218, %v2071, %v2073
    %v2082 = vsel %vm218, %v2073, %v2075
    %v2091 = vadd.f32 %v2034, %v2076
    %v2092 = vadd.f32 %v2035, %v2077
    %v2093 = vadd.f32 %v2036, %v2078
    %v2094 = vadd.f32 %v2037, %v2079
    %v2095 = vadd.f32 %v2038, %v2080
    %v2096 = vadd.f32 %v2039, %v2081
    %v2097 = vadd.f32 %v2040, %v2082
    %v2098 = vadd.f32 %v2041, %v2075
    %s2099 = sld [smem:[#allocation8 + $0x26]]
    %v2100 = vstv %s2099
    %v2101 = vmul.f32 %v166, %v2100
    %v2102 = vmul.f32 %v167, %v2100
    %v2103 = vmul.f32 %v168, %v2100
    %v2104 = vmul.f32 %v169, %v2100
    %v2105 = vmul.f32 %v170, %v2100
    %v2106 = vmul.f32 %v171, %v2100
    %v2107 = vmul.f32 %v172, %v2100
    %v2108 = vmul.f32 %v173, %v2100
    %2117 = vrot.lane.b32.xlu0 %v2101, 97
    %v2118 = vpop.permute.xlu0 %2117
    %2119 = vrot.lane.b32.xlu0 %v2102, 97
    %v2120 = vpop.permute.xlu0 %2119
    %2121 = vrot.lane.b32.xlu0 %v2103, 97
    %v2122 = vpop.permute.xlu0 %2121
    %2123 = vrot.lane.b32.xlu0 %v2104, 97
    %v2124 = vpop.permute.xlu0 %2123
    %2125 = vrot.lane.b32.xlu0 %v2105, 97
    %v2126 = vpop.permute.xlu0 %2125
    %2127 = vrot.lane.b32.xlu0 %v2106, 97
    %v2128 = vpop.permute.xlu0 %2127
    %2129 = vrot.lane.b32.xlu0 %v2107, 97
    %v2130 = vpop.permute.xlu0 %2129
    %2131 = vrot.lane.b32.xlu0 %v2108, 97
    %v2132 = vpop.permute.xlu0 %2131
    %v2133 = vsel %vm276, %v2118, %v2120
    %v2134 = vsel %vm276, %v2120, %v2122
    %v2135 = vsel %vm276, %v2122, %v2124
    %v2136 = vsel %vm276, %v2124, %v2126
    %v2137 = vsel %vm276, %v2126, %v2128
    %v2138 = vsel %vm276, %v2128, %v2130
    %v2139 = vsel %vm276, %v2130, %v2132
    %v2148 = vadd.f32 %v2091, %v2133
    %v2149 = vadd.f32 %v2092, %v2134
    %v2150 = vadd.f32 %v2093, %v2135
    %v2151 = vadd.f32 %v2094, %v2136
    %v2152 = vadd.f32 %v2095, %v2137
    %v2153 = vadd.f32 %v2096, %v2138
    %v2154 = vadd.f32 %v2097, %v2139
    %v2155 = vadd.f32 %v2098, %v2132
    %s2156 = sld [smem:[#allocation8 + $0x27]]
    %v2157 = vstv %s2156
    %v2158 = vmul.f32 %v166, %v2157
    %v2159 = vmul.f32 %v167, %v2157
    %v2160 = vmul.f32 %v168, %v2157
    %v2161 = vmul.f32 %v169, %v2157
    %v2162 = vmul.f32 %v170, %v2157
    %v2163 = vmul.f32 %v171, %v2157
    %v2164 = vmul.f32 %v172, %v2157
    %v2165 = vmul.f32 %v173, %v2157
    %2174 = vrot.lane.b32.xlu0 %v2158, 96
    %v2175 = vpop.permute.xlu0 %2174
    %2176 = vrot.lane.b32.xlu0 %v2159, 96
    %v2177 = vpop.permute.xlu0 %2176
    %2178 = vrot.lane.b32.xlu0 %v2160, 96
    %v2179 = vpop.permute.xlu0 %2178
    %2180 = vrot.lane.b32.xlu0 %v2161, 96
    %v2181 = vpop.permute.xlu0 %2180
    %2182 = vrot.lane.b32.xlu0 %v2162, 96
    %v2183 = vpop.permute.xlu0 %2182
    %2184 = vrot.lane.b32.xlu0 %v2163, 96
    %v2185 = vpop.permute.xlu0 %2184
    %2186 = vrot.lane.b32.xlu0 %v2164, 96
    %v2187 = vpop.permute.xlu0 %2186
    %2188 = vrot.lane.b32.xlu0 %v2165, 96
    %v2189 = vpop.permute.xlu0 %2188
    %v2190 = vsel %vm334, %v2175, %v2177
    %v2191 = vsel %vm334, %v2177, %v2179
    %v2192 = vsel %vm334, %v2179, %v2181
    %v2193 = vsel %vm334, %v2181, %v2183
    %v2194 = vsel %vm334, %v2183, %v2185
    %v2195 = vsel %vm334, %v2185, %v2187
    %v2196 = vsel %vm334, %v2187, %v2189
    %v2205 = vadd.f32 %v2148, %v2190
    %v2206 = vadd.f32 %v2149, %v2191
    %v2207 = vadd.f32 %v2150, %v2192
    %v2208 = vadd.f32 %v2151, %v2193
    %v2209 = vadd.f32 %v2152, %v2194
    %v2210 = vadd.f32 %v2153, %v2195
    %v2211 = vadd.f32 %v2154, %v2196
    %v2212 = vadd.f32 %v2155, %v2189
    %v2213 = vsel %vm108, %v2205, -inf
    %v2214 = vsel %vm109, %v2206, -inf
    %v2215 = vsel %vm110, %v2207, -inf
    %v2216 = vsel %vm111, %v2208, -inf
    %v2217 = vsel %vm112, %v2209, -inf
    %v2218 = vsel %vm113, %v2210, -inf
    %v2219 = vsel %vm114, %v2211, -inf
    %v2220 = vsel %vm115, %v2212, -inf
    %v2221 = vmax.f32 %v2213, %v2217
    %v2222 = vmax.f32 %v2214, %v2218
    %v2223 = vmax.f32 %v2215, %v2219
    %v2224 = vsel %vm369, %v2220, -inf
    %v2225 = vmax.f32 %v2216, %v2224
    %v2226 = vmax.f32 %v2221, %v2222
    %v2227 = vmax.f32 %v2223, %v2225
    %v2228 = vmax.f32 %v2226, %v2227
    %2229 = vmax.xlane.f32.xlu0 %v2228
    %v2230 = vpop.xlane.xlu0 %2229
    %v2231 = vmax.f32 %v2230, 0.0
    %v2232 = vlaneseq
    %v2233 = vshrl.u32 %v2232, 7
    %v2234 = vsub.s32 1, %v2233
    %v2235 = vrot.slane %v117, %v2234
    %v2236 = vmul.f32 %v2231, %v2235
    %v2237 = vadd.f32 %v2031, %v2236
    %vm2238 = vcmask 80896
    %v2239 = vsel %vm2238, %v2237, -inf
    %2240 = vmax.xlane.f32.xlu0 %v2239
    %v2241 = vpop.xlane.xlu0 %2240
    %v2242 = vsub.f32 %v2237, %v2241
    %v2243 = vmul.f32 %v2242, 1.442695
    %v2244 = vpow.pop %v2243
    %v2245 = vsel %vm2238, %v2244, 0.0
    %2246 = vadd.xlane.f32.xlu0 %v2245
    %v2247 = vpop.xlane.xlu0 %2246
    %v2248 = vrcp.pop %v2247
    %v2249 = vmul.f32 %v2247, %v2248
    %v2250 = vsub.f32 2.0, %v2249
    %v2251 = vmul.f32 %v2248, %v2250
    %v2252 = vmul.f32 %v2244, %v2251
    %2253 = vst.msk [vmem:[#allocation10] sm:$0xff] %vm2238, %v2252
    // Predicated region
    $region38: #{tpu_custom_call.1} parent=1 // pred_check
      _
    $region39: #{tpu_custom_call.1} parent=1 // pred_check_branch
      %2255 = sbr.rel (0) target = $region41
    $region40: #{tpu_custom_call.1} parent=1 // pred_region
      %s2257 = ssub.s32 128, 128
      %2258 = vsyncadd [#allocation4], %s2257
      %s2260 = sshll.u32 [#allocation10], 4
      %s2261 = int_to_ptr.vmem [resolvable:$true] %s2260
      %2263 = dma.vmem_to_hbm [thread:$0]  %s2261, 128, %s5, [#allocation4]
    $region41: #{tpu_custom_call.1} parent=1 // pred_fallthru
      _
    // Predicated region
    $region42: #{tpu_custom_call.1} parent=1 // pred_check
      _
    $region43: #{tpu_custom_call.1} parent=1 // pred_check_branch
      %2265 = sbr.rel (0) target = $region45
    $region44: #{tpu_custom_call.1} parent=1 // pred_region
      %2266 = dma.done [#allocation4], 128
    $region45: #{tpu_custom_call.1} parent=1 // pred_fallthru
      _
    %2267 = vsyncpa [#allocation3], 1
    %2268 = vsyncpa [#allocation7], 1
    %2269 = vsyncpa [#allocation4], 1
    %2270 = vsyncpa [#allocation5], 1

</llo_original>
